<compile_context>
chip_gen: v5e
topology: v5e:2x2
jax: 0.10.0
libtpu: 0.0.40
codegen_flags: <defaults>
</compile_context>

<pallas_src>
import jax
import jax.numpy as jnp
from jax.experimental import pallas as pl
from jax.experimental.pallas import tpu as pltpu

HIDDEN = 64
BOTTLENECK = 16
LANE = 128            # TPU lane width; OUTPUT feature dim padded to this
NEG_SLOPE = 0.2


def _leaky_relu(x, neg_slope=NEG_SLOPE):
    return jnp.where(x >= 0, x, neg_slope * x)


def autoencoder_kernel(x_ref,
                       w1_ref, b1_ref,
                       w2_ref, b2_ref,
                       w34_ref, b34_ref,
                       w5_ref, b5_ref,
                       w6_ref, b6_ref,
                       out_ref):
    # x block: (tb, input_size) bf16 (cast once in the wrapper; the first MXU op
    # would round to bf16 anyway, so numerics are identical to shipping f32).
    # Weights bf16, biases f32. All dots accumulate in f32; bias add + LeakyReLU
    # stay f32 on the VPU.
    h = jnp.dot(x_ref[...], w1_ref[...],
                preferred_element_type=jnp.float32) + b1_ref[...]
    h = _leaky_relu(h)                               # Dropout(0.2) -> identity (eval)
    h = jnp.dot(h.astype(jnp.bfloat16), w2_ref[...],
                preferred_element_type=jnp.float32) + b2_ref[...]
    h = _leaky_relu(h)                               # Dropout(0.2) -> identity (eval)
    # Fused bottleneck: encoder L3 (32->16) and decoder L1 (16->32) have no
    # activation between them, so they are folded into one 32->32 matmul.
    h = jnp.dot(h.astype(jnp.bfloat16), w34_ref[...],
                preferred_element_type=jnp.float32) + b34_ref[...]
    h = _leaky_relu(h)
    h = jnp.dot(h.astype(jnp.bfloat16), w5_ref[...],
                preferred_element_type=jnp.float32) + b5_ref[...]
    h = _leaky_relu(h)
    y = jnp.dot(h.astype(jnp.bfloat16), w6_ref[...],
                preferred_element_type=jnp.float32) + b6_ref[...]
    out_ref[...] = y.astype(out_ref.dtype)


def init_params(key, input_size):
    """nn.Linear-style init (uniform +/- 1/sqrt(fan_in)); weights stored (in, out)."""
    dims = [(input_size, HIDDEN), (HIDDEN, HIDDEN // 2), (HIDDEN // 2, BOTTLENECK),
            (BOTTLENECK, HIDDEN // 2), (HIDDEN // 2, HIDDEN), (HIDDEN, input_size)]
    params = []
    for fan_in, fan_out in dims:
        key, kw, kb = jax.random.split(key, 3)
        bound = 1.0 / float(fan_in) ** 0.5
        w = jax.random.uniform(kw, (fan_in, fan_out), jnp.float32, -bound, bound)
        b = jax.random.uniform(kb, (1, fan_out), jnp.float32, -bound, bound)
        params.append((w, b))
    return params


def prepare_params(params, input_size, f_out_pad):
    """Fold the un-activated bottleneck pair (L3 @ L4) in f32, cast weights to bf16.

    Returns (kernel_params, ref_params). kernel_params additionally zero-pad the
    LAST weight's output columns (and its bias) to f_out_pad so the kernel output
    is lane-dense; padded columns are exactly zero so results in the real columns
    are unchanged. The first weight stays at its natural (input_size, HIDDEN).
    """
    (w1, b1), (w2, b2), (w3, b3), (w4, b4), (w5, b5), (w6, b6) = params
    w34 = w3 @ w4                       # f32 fold at trace time (intentional approx)
    b34 = b3 @ w4 + b4
    fused = [(w1, b1), (w2, b2), (w34, b34), (w5, b5), (w6, b6)]
    ref_params = [(w.astype(jnp.bfloat16), b) for w, b in fused]

    w6p = jnp.zeros((w6.shape[0], f_out_pad), jnp.float32).at[:, :input_size].set(w6)
    b6p = jnp.zeros((1, f_out_pad), jnp.float32).at[:, :input_size].set(b6)
    padded = [(w1, b1), (w2, b2), (w34, b34), (w5, b5), (w6p, b6p)]
    kernel_params = [(w.astype(jnp.bfloat16), b) for w, b in padded]
    return kernel_params, ref_params


def advanced_autoencoder_forward(x, params, *, tb_max=512):
    """x: (B, input_size) float32. params: 6 x (W_t, b) f32 with W_t:(in, out).

    tb_max: upper bound on the batch tile. 512 amortizes per-step overhead
    (~0.35 us/step) while keeping per-buffer VMEM < 0.5 MiB -> safe on every
    generation (v7x 32 MiB scoped default included). Raise on v5e/v6e for very
    large batches if desired.
    """
    B, input_size = x.shape
    f_out_pad = max(LANE, pl.cdiv(input_size, LANE) * LANE)

    # Adaptive batch tile: never larger than round_up(B, 8) so small batches
    # don't drag up to tb-1 padded rows through the network.
    tb = min(tb_max, ((B + 7) // 8) * 8)
    n_blocks = pl.cdiv(B, tb)
    b_pad = n_blocks * tb

    kernel_params, _ = prepare_params(params, input_size, f_out_pad)

    # bf16 input at natural feature width (last block dim == full array dim).
    x_bf16 = x.astype(jnp.bfloat16)
    if b_pad == B:
        x_p = x_bf16
    else:
        x_p = jnp.zeros((b_pad, input_size), jnp.bfloat16).at[:B, :].set(x_bf16)

    flat_args = [x_p]
    in_specs = [pl.BlockSpec((tb, input_size), lambda i: (i, 0))]
    for w, b in kernel_params:
        flat_args += [w, b]
        # Constant index maps -> weights/biases stay VMEM-resident across steps.
        in_specs += [pl.BlockSpec(w.shape, lambda i: (0, 0)),
                     pl.BlockSpec(b.shape, lambda i: (0, 0))]

    h2 = HIDDEN // 2
    flops = 2 * b_pad * (input_size * HIDDEN + HIDDEN * h2 + h2 * h2
                         + h2 * HIDDEN + HIDDEN * f_out_pad)
    param_bytes = sum(int(w.size) * w.dtype.itemsize + int(b.size) * b.dtype.itemsize
                      for w, b in kernel_params)
    bytes_accessed = (b_pad * input_size * 2      # bf16 input stream
                      + b_pad * f_out_pad * 4     # f32 lane-dense output stream
                      + param_bytes)

    out = pl.pallas_call(
        autoencoder_kernel,
        out_shape=jax.ShapeDtypeStruct((b_pad, f_out_pad), jnp.float32),
        grid=(n_blocks,),
        in_specs=in_specs,
        out_specs=pl.BlockSpec((tb, f_out_pad), lambda i: (i, 0)),
        compiler_params=pltpu.CompilerParams(dimension_semantics=("parallel",)),
        cost_estimate=pl.CostEstimate(flops=flops, transcendentals=0,
                                      bytes_accessed=bytes_accessed),
    )(*flat_args)
    return out[:B, :input_size]


def reference_forward_f32(x, params):
    """Pure-f32 reference matching the PyTorch module in eval mode."""
    h = x
    for i, (w, b) in enumerate(params):
        h = h @ w + b
        if i in (0, 1, 3, 4):
            h = jnp.where(h >= 0, h, NEG_SLOPE * h)
    return h


def reference_forward_bf16(x, fused_params):
    """Mimics kernel numerics: bf16 operands, f32 accumulation, fused bottleneck."""
    h = x
    n = len(fused_params)
    for i, (w, b) in enumerate(fused_params):
        h = jnp.dot(h.astype(jnp.bfloat16), w,
                    preferred_element_type=jnp.float32) + b
        if i < n - 1:
            h = jnp.where(h >= 0, h, NEG_SLOPE * h)
    return h


if __name__ == "__main__":
    key = jax.random.PRNGKey(0)
    batch = 256
    input_size = 32

    kx, kp = jax.random.split(key)
    x = jax.random.normal(kx, (batch, input_size), dtype=jnp.float32)
    params = init_params(kp, input_size)

    out = advanced_autoencoder_forward(x, params)
    out = jax.block_until_ready(out)
    assert out.shape == (batch, input_size)

    # Tight check against a reference with the same numerics as the kernel.
    _, ref_params = prepare_params(params, input_size, LANE)
    ref_tight = reference_forward_bf16(x, ref_params)
    assert jnp.allclose(out, ref_tight, atol=1e-3, rtol=1e-3), \
        float(jnp.max(jnp.abs(out - ref_tight)))

    # Loose sanity check against pure-f32 module semantics (bf16 weights and
    # the folded bottleneck introduce ~1% relative error; intentional).
    ref_f32 = reference_forward_f32(x, params)
    assert jnp.allclose(out, ref_f32, atol=5e-2, rtol=5e-2), \
        float(jnp.max(jnp.abs(out - ref_f32)))

    print("KERNEL_OK")
</pallas_src>

<mosaic_0001>
module attributes {stable_mosaic.version = 11 : i64} {
  func.func @autoencoder_kernel(%arg0: i32, %arg1: memref<256x32xbf16, #tpu.memory_space<vmem>>, %arg2: memref<32x64xbf16, #tpu.memory_space<vmem>>, %arg3: memref<1x64xf32, #tpu.memory_space<vmem>>, %arg4: memref<64x32xbf16, #tpu.memory_space<vmem>>, %arg5: memref<1x32xf32, #tpu.memory_space<vmem>>, %arg6: memref<32x32xbf16, #tpu.memory_space<vmem>>, %arg7: memref<1x32xf32, #tpu.memory_space<vmem>>, %arg8: memref<32x64xbf16, #tpu.memory_space<vmem>>, %arg9: memref<1x64xf32, #tpu.memory_space<vmem>>, %arg10: memref<64x128xbf16, #tpu.memory_space<vmem>>, %arg11: memref<1x128xf32, #tpu.memory_space<vmem>>, %arg12: memref<256x128xf32, #tpu.memory_space<vmem>>) attributes {dimension_semantics = [#tpu.dimension_semantics<parallel>], iteration_bounds = array<i64: 1>, scalar_prefetch = 0 : i64, scratch_operands = 0 : i64, tpu.core_type = #tpu.core_type<tc>, window_params = [{transform_indices = @transform_0, window_bounds = array<i64: 256, 32>}, {pipeline_mode = #tpu.pipeline_mode<synchronous>, transform_indices = @transform_1, window_bounds = array<i64: 32, 64>}, {pipeline_mode = #tpu.pipeline_mode<synchronous>, transform_indices = @transform_2, window_bounds = array<i64: 1, 64>}, {pipeline_mode = #tpu.pipeline_mode<synchronous>, transform_indices = @transform_3, window_bounds = array<i64: 64, 32>}, {pipeline_mode = #tpu.pipeline_mode<synchronous>, transform_indices = @transform_4, window_bounds = array<i64: 1, 32>}, {pipeline_mode = #tpu.pipeline_mode<synchronous>, transform_indices = @transform_5, window_bounds = array<i64: 32, 32>}, {pipeline_mode = #tpu.pipeline_mode<synchronous>, transform_indices = @transform_6, window_bounds = array<i64: 1, 32>}, {pipeline_mode = #tpu.pipeline_mode<synchronous>, transform_indices = @transform_7, window_bounds = array<i64: 32, 64>}, {pipeline_mode = #tpu.pipeline_mode<synchronous>, transform_indices = @transform_8, window_bounds = array<i64: 1, 64>}, {pipeline_mode = #tpu.pipeline_mode<synchronous>, transform_indices = @transform_9, window_bounds = array<i64: 64, 128>}, {pipeline_mode = #tpu.pipeline_mode<synchronous>, transform_indices = @transform_10, window_bounds = array<i64: 1, 128>}, {transform_indices = @transform_11, window_bounds = array<i64: 256, 128>}]} {
    %c0 = arith.constant 0 : index
    %c0_0 = arith.constant 0 : index
    %0 = vector.load %arg1[%c0, %c0_0] : memref<256x32xbf16, #tpu.memory_space<vmem>>, vector<256x32xbf16>
    %c0_1 = arith.constant 0 : index
    %c0_2 = arith.constant 0 : index
    %1 = vector.load %arg2[%c0_1, %c0_2] : memref<32x64xbf16, #tpu.memory_space<vmem>>, vector<32x64xbf16>
    %cst = arith.constant dense<0.000000e+00> : vector<256x64xf32>
    %2 = tpu.matmul %0, %1, %cst {dimension_numbers = #tpu.dot_dimension_numbers<[1], [0], [0], [1], [0, 0, 1, 1], [], []>} : vector<256x32xbf16>, vector<32x64xbf16>, vector<256x64xf32> -> vector<256x64xf32>
    %c0_3 = arith.constant 0 : index
    %c0_4 = arith.constant 0 : index
    %3 = vector.load %arg3[%c0_3, %c0_4] : memref<1x64xf32, #tpu.memory_space<vmem>>, vector<1x64xf32>
    %4 = vector.broadcast %3 : vector<1x64xf32> to vector<256x64xf32>
    %5 = arith.addf %2, %4 : vector<256x64xf32>
    %cst_5 = arith.constant 0.000000e+00 : f32
    %6 = vector.broadcast %cst_5 : f32 to vector<256x64xf32>
    %7 = arith.cmpf oge, %5, %6 : vector<256x64xf32>
    %cst_6 = arith.constant 2.000000e-01 : f32
    %8 = vector.broadcast %cst_6 : f32 to vector<256x64xf32>
    %9 = arith.mulf %8, %5 : vector<256x64xf32>
    %10 = arith.select %7, %5, %9 : vector<256x64xi1>, vector<256x64xf32>
    %11 = arith.truncf %10 : vector<256x64xf32> to vector<256x64xbf16>
    %c0_7 = arith.constant 0 : index
    %c0_8 = arith.constant 0 : index
    %12 = vector.load %arg4[%c0_7, %c0_8] : memref<64x32xbf16, #tpu.memory_space<vmem>>, vector<64x32xbf16>
    %cst_9 = arith.constant dense<0.000000e+00> : vector<256x32xf32>
    %13 = tpu.matmul %11, %12, %cst_9 {dimension_numbers = #tpu.dot_dimension_numbers<[1], [0], [0], [1], [0, 0, 1, 1], [], []>} : vector<256x64xbf16>, vector<64x32xbf16>, vector<256x32xf32> -> vector<256x32xf32>
    %c0_10 = arith.constant 0 : index
    %c0_11 = arith.constant 0 : index
    %14 = vector.load %arg5[%c0_10, %c0_11] : memref<1x32xf32, #tpu.memory_space<vmem>>, vector<1x32xf32>
    %15 = vector.broadcast %14 : vector<1x32xf32> to vector<256x32xf32>
    %16 = arith.addf %13, %15 : vector<256x32xf32>
    %cst_12 = arith.constant 0.000000e+00 : f32
    %17 = vector.broadcast %cst_12 : f32 to vector<256x32xf32>
    %18 = arith.cmpf oge, %16, %17 : vector<256x32xf32>
    %cst_13 = arith.constant 2.000000e-01 : f32
    %19 = vector.broadcast %cst_13 : f32 to vector<256x32xf32>
    %20 = arith.mulf %19, %16 : vector<256x32xf32>
    %21 = arith.select %18, %16, %20 : vector<256x32xi1>, vector<256x32xf32>
    %22 = arith.truncf %21 : vector<256x32xf32> to vector<256x32xbf16>
    %c0_14 = arith.constant 0 : index
    %c0_15 = arith.constant 0 : index
    %23 = vector.load %arg6[%c0_14, %c0_15] : memref<32x32xbf16, #tpu.memory_space<vmem>>, vector<32x32xbf16>
    %cst_16 = arith.constant dense<0.000000e+00> : vector<256x32xf32>
    %24 = tpu.matmul %22, %23, %cst_16 {dimension_numbers = #tpu.dot_dimension_numbers<[1], [0], [0], [1], [0, 0, 1, 1], [], []>} : vector<256x32xbf16>, vector<32x32xbf16>, vector<256x32xf32> -> vector<256x32xf32>
    %c0_17 = arith.constant 0 : index
    %c0_18 = arith.constant 0 : index
    %25 = vector.load %arg7[%c0_17, %c0_18] : memref<1x32xf32, #tpu.memory_space<vmem>>, vector<1x32xf32>
    %26 = vector.broadcast %25 : vector<1x32xf32> to vector<256x32xf32>
    %27 = arith.addf %24, %26 : vector<256x32xf32>
    %cst_19 = arith.constant 0.000000e+00 : f32
    %28 = vector.broadcast %cst_19 : f32 to vector<256x32xf32>
    %29 = arith.cmpf oge, %27, %28 : vector<256x32xf32>
    %cst_20 = arith.constant 2.000000e-01 : f32
    %30 = vector.broadcast %cst_20 : f32 to vector<256x32xf32>
    %31 = arith.mulf %30, %27 : vector<256x32xf32>
    %32 = arith.select %29, %27, %31 : vector<256x32xi1>, vector<256x32xf32>
    %33 = arith.truncf %32 : vector<256x32xf32> to vector<256x32xbf16>
    %c0_21 = arith.constant 0 : index
    %c0_22 = arith.constant 0 : index
    %34 = vector.load %arg8[%c0_21, %c0_22] : memref<32x64xbf16, #tpu.memory_space<vmem>>, vector<32x64xbf16>
    %cst_23 = arith.constant dense<0.000000e+00> : vector<256x64xf32>
    %35 = tpu.matmul %33, %34, %cst_23 {dimension_numbers = #tpu.dot_dimension_numbers<[1], [0], [0], [1], [0, 0, 1, 1], [], []>} : vector<256x32xbf16>, vector<32x64xbf16>, vector<256x64xf32> -> vector<256x64xf32>
    %c0_24 = arith.constant 0 : index
    %c0_25 = arith.constant 0 : index
    %36 = vector.load %arg9[%c0_24, %c0_25] : memref<1x64xf32, #tpu.memory_space<vmem>>, vector<1x64xf32>
    %37 = vector.broadcast %36 : vector<1x64xf32> to vector<256x64xf32>
    %38 = arith.addf %35, %37 : vector<256x64xf32>
    %cst_26 = arith.constant 0.000000e+00 : f32
    %39 = vector.broadcast %cst_26 : f32 to vector<256x64xf32>
    %40 = arith.cmpf oge, %38, %39 : vector<256x64xf32>
    %cst_27 = arith.constant 2.000000e-01 : f32
    %41 = vector.broadcast %cst_27 : f32 to vector<256x64xf32>
    %42 = arith.mulf %41, %38 : vector<256x64xf32>
    %43 = arith.select %40, %38, %42 : vector<256x64xi1>, vector<256x64xf32>
    %44 = arith.truncf %43 : vector<256x64xf32> to vector<256x64xbf16>
    %c0_28 = arith.constant 0 : index
    %c0_29 = arith.constant 0 : index
    %45 = vector.load %arg10[%c0_28, %c0_29] : memref<64x128xbf16, #tpu.memory_space<vmem>>, vector<64x128xbf16>
    %cst_30 = arith.constant dense<0.000000e+00> : vector<256x128xf32>
    %46 = tpu.matmul %44, %45, %cst_30 {dimension_numbers = #tpu.dot_dimension_numbers<[1], [0], [0], [1], [0, 0, 1, 1], [], []>} : vector<256x64xbf16>, vector<64x128xbf16>, vector<256x128xf32> -> vector<256x128xf32>
    %c0_31 = arith.constant 0 : index
    %c0_32 = arith.constant 0 : index
    %47 = vector.load %arg11[%c0_31, %c0_32] : memref<1x128xf32, #tpu.memory_space<vmem>>, vector<1x128xf32>
    %48 = vector.broadcast %47 : vector<1x128xf32> to vector<256x128xf32>
    %49 = arith.addf %46, %48 : vector<256x128xf32>
    %c0_33 = arith.constant 0 : index
    %c0_34 = arith.constant 0 : index
    %50 = vector.load %arg12[%c0_33, %c0_34] : memref<256x128xf32, #tpu.memory_space<vmem>>, vector<256x128xf32>
    tpu.vector_store %arg12[%c0_33, %c0_34], %49 {strides = array<i32>} : memref<256x128xf32, #tpu.memory_space<vmem>>, vector<256x128xf32>,
    return
  }
  func.func @transform_0(%arg0: i32) -> (i32, i32) {
    %c0_i32 = arith.constant 0 : i32
    %c0_i32_0 = arith.constant 0 : i32
    return %arg0, %c0_i32 : i32, i32
  }
  func.func @transform_1(%arg0: i32) -> (i32, i32) {
    %c0_i32 = arith.constant 0 : i32
    %c0_i32_0 = arith.constant 0 : i32
    %c0_i32_1 = arith.constant 0 : i32
    return %c0_i32, %c0_i32_0 : i32, i32
  }
  func.func @transform_2(%arg0: i32) -> (i32, i32) {
    %c0_i32 = arith.constant 0 : i32
    %c0_i32_0 = arith.constant 0 : i32
    %c0_i32_1 = arith.constant 0 : i32
    return %c0_i32, %c0_i32_0 : i32, i32
  }
  func.func @transform_3(%arg0: i32) -> (i32, i32) {
    %c0_i32 = arith.constant 0 : i32
    %c0_i32_0 = arith.constant 0 : i32
    %c0_i32_1 = arith.constant 0 : i32
    return %c0_i32, %c0_i32_0 : i32, i32
  }
  func.func @transform_4(%arg0: i32) -> (i32, i32) {
    %c0_i32 = arith.constant 0 : i32
    %c0_i32_0 = arith.constant 0 : i32
    %c0_i32_1 = arith.constant 0 : i32
    return %c0_i32, %c0_i32_0 : i32, i32
  }
  func.func @transform_5(%arg0: i32) -> (i32, i32) {
    %c0_i32 = arith.constant 0 : i32
    %c0_i32_0 = arith.constant 0 : i32
    %c0_i32_1 = arith.constant 0 : i32
    return %c0_i32, %c0_i32_0 : i32, i32
  }
  func.func @transform_6(%arg0: i32) -> (i32, i32) {
    %c0_i32 = arith.constant 0 : i32
    %c0_i32_0 = arith.constant 0 : i32
    %c0_i32_1 = arith.constant 0 : i32
    return %c0_i32, %c0_i32_0 : i32, i32
  }
  func.func @transform_7(%arg0: i32) -> (i32, i32) {
    %c0_i32 = arith.constant 0 : i32
    %c0_i32_0 = arith.constant 0 : i32
    %c0_i32_1 = arith.constant 0 : i32
    return %c0_i32, %c0_i32_0 : i32, i32
  }
  func.func @transform_8(%arg0: i32) -> (i32, i32) {
    %c0_i32 = arith.constant 0 : i32
    %c0_i32_0 = arith.constant 0 : i32
    %c0_i32_1 = arith.constant 0 : i32
    return %c0_i32, %c0_i32_0 : i32, i32
  }
  func.func @transform_9(%arg0: i32) -> (i32, i32) {
    %c0_i32 = arith.constant 0 : i32
    %c0_i32_0 = arith.constant 0 : i32
    %c0_i32_1 = arith.constant 0 : i32
    return %c0_i32, %c0_i32_0 : i32, i32
  }
  func.func @transform_10(%arg0: i32) -> (i32, i32) {
    %c0_i32 = arith.constant 0 : i32
    %c0_i32_0 = arith.constant 0 : i32
    %c0_i32_1 = arith.constant 0 : i32
    return %c0_i32, %c0_i32_0 : i32, i32
  }
  func.func @transform_11(%arg0: i32) -> (i32, i32) {
    %c0_i32 = arith.constant 0 : i32
    %c0_i32_0 = arith.constant 0 : i32
    return %arg0, %c0_i32 : i32, i32
  }
}

</mosaic_0001>

<llo_original>
// kernel: tpu_custom_call.1
$region0: #{tpu_custom_call.1}
  #allocation0 [shape = 'u32[]', space=smem, size = 0x4, offset = 0x4, fixed_abs, tag = 'smem constant byte address 0x4 - core index']
  #allocation1 [shape = 'u32[72,128]{1,0:T(1,128)}', space=vmem, size = 0x9000, scoped, tag = 'internal scratch']
  %s0 = inlined_call_operand.vmem [shape: bf16[256,32], index: 0, kind: input, shape index: {}]
  %s1 = inlined_call_operand.vmem [shape: bf16[32,64], index: 1, kind: input, shape index: {}]
  %s2 = inlined_call_operand.vmem [shape: f32[1,64], index: 2, kind: input, shape index: {}]
  %s3 = inlined_call_operand.vmem [shape: bf16[64,32], index: 3, kind: input, shape index: {}]
  %s4 = inlined_call_operand.vmem [shape: f32[1,32], index: 4, kind: input, shape index: {}]
  %s5 = inlined_call_operand.vmem [shape: bf16[32,32], index: 5, kind: input, shape index: {}]
  %s6 = inlined_call_operand.vmem [shape: f32[1,32], index: 6, kind: input, shape index: {}]
  %s7 = inlined_call_operand.vmem [shape: bf16[32,64], index: 7, kind: input, shape index: {}]
  %s8 = inlined_call_operand.vmem [shape: f32[1,64], index: 8, kind: input, shape index: {}]
  %s9 = inlined_call_operand.vmem [shape: bf16[64,128], index: 9, kind: input, shape index: {}]
  %s10 = inlined_call_operand.vmem [shape: f32[1,128], index: 10, kind: input, shape index: {}]
  %s11 = inlined_call_operand.hbm [shape: f32[256,128], index: 11, kind: output, shape index: {}]
  %s12 = sld [smem:[#allocation0]]
  $region54: #{tpu_custom_call.1} parent=0
    _
  %s14 = ssub.s32 1, %s12
  %s15 = scalar_select 0, %s14, %s12
  $region1: #{tpu_custom_call.1} parent=0
    #allocation2 [shape = 'u8[131072]{0}', space=vmem, size = 0x20000, scoped, tag = 'output window, operand 0, single buffered']
    #allocation3 [shape = 's32[1]{0}', space=sflag, size = 0x4, scoped, tag = 'scoped memory for tpu_custom_call.1']
    %16 = vsyncpa [#allocation3], 0
    // Predicated region
    $region2: #{tpu_custom_call.1} parent=1 // pred_check
      _
    $region3: #{tpu_custom_call.1} parent=1 // pred_check_branch
      %18 = sbr.rel (0) target = $region5
    $region4: #{tpu_custom_call.1} parent=1 // pred_region
      _
    $region5: #{tpu_custom_call.1} parent=1 // pred_fallthru
      _
    // Predicated region
    $region6: #{tpu_custom_call.1} parent=1 // pred_check
      _
    $region7: #{tpu_custom_call.1} parent=1 // pred_check_branch
      %20 = sbr.rel (0) target = $region9
    $region8: #{tpu_custom_call.1} parent=1 // pred_region
      _
    $region9: #{tpu_custom_call.1} parent=1 // pred_fallthru
      _
    // Predicated region
    $region10: #{tpu_custom_call.1} parent=1 // pred_check
      _
    $region11: #{tpu_custom_call.1} parent=1 // pred_check_branch
      %22 = sbr.rel (0) target = $region13
    $region12: #{tpu_custom_call.1} parent=1 // pred_region
      _
    $region13: #{tpu_custom_call.1} parent=1 // pred_fallthru
      _
    // Predicated region
    $region14: #{tpu_custom_call.1} parent=1 // pred_check
      _
    $region15: #{tpu_custom_call.1} parent=1 // pred_check_branch
      %24 = sbr.rel (0) target = $region17
    $region16: #{tpu_custom_call.1} parent=1 // pred_region
      _
    $region17: #{tpu_custom_call.1} parent=1 // pred_fallthru
      _
    // Predicated region
    $region18: #{tpu_custom_call.1} parent=1 // pred_check
      _
    $region19: #{tpu_custom_call.1} parent=1 // pred_check_branch
      %26 = sbr.rel (0) target = $region21
    $region20: #{tpu_custom_call.1} parent=1 // pred_region
      _
    $region21: #{tpu_custom_call.1} parent=1 // pred_fallthru
      _
    // Predicated region
    $region22: #{tpu_custom_call.1} parent=1 // pred_check
      _
    $region23: #{tpu_custom_call.1} parent=1 // pred_check_branch
      %28 = sbr.rel (0) target = $region25
    $region24: #{tpu_custom_call.1} parent=1 // pred_region
      _
    $region25: #{tpu_custom_call.1} parent=1 // pred_fallthru
      _
    // Predicated region
    $region26: #{tpu_custom_call.1} parent=1 // pred_check
      _
    $region27: #{tpu_custom_call.1} parent=1 // pred_check_branch
      %30 = sbr.rel (0) target = $region29
    $region28: #{tpu_custom_call.1} parent=1 // pred_region
      _
    $region29: #{tpu_custom_call.1} parent=1 // pred_fallthru
      _
    // Predicated region
    $region30: #{tpu_custom_call.1} parent=1 // pred_check
      _
    $region31: #{tpu_custom_call.1} parent=1 // pred_check_branch
      %32 = sbr.rel (0) target = $region33
    $region32: #{tpu_custom_call.1} parent=1 // pred_region
      _
    $region33: #{tpu_custom_call.1} parent=1 // pred_fallthru
      _
    // Predicated region
    $region34: #{tpu_custom_call.1} parent=1 // pred_check
      _
    $region35: #{tpu_custom_call.1} parent=1 // pred_check_branch
      %34 = sbr.rel (0) target = $region37
    $region36: #{tpu_custom_call.1} parent=1 // pred_region
      _
    $region37: #{tpu_custom_call.1} parent=1 // pred_fallthru
      _
    // Predicated region
    $region38: #{tpu_custom_call.1} parent=1 // pred_check
      _
    $region39: #{tpu_custom_call.1} parent=1 // pred_check_branch
      %36 = sbr.rel (0) target = $region41
    $region40: #{tpu_custom_call.1} parent=1 // pred_region
      _
    $region41: #{tpu_custom_call.1} parent=1 // pred_fallthru
      _
    // Predicated region
    $region42: #{tpu_custom_call.1} parent=1 // pred_check
      _
    $region43: #{tpu_custom_call.1} parent=1 // pred_check_branch
      %38 = sbr.rel (0) target = $region45
    $region44: #{tpu_custom_call.1} parent=1 // pred_region
      _
    $region45: #{tpu_custom_call.1} parent=1 // pred_fallthru
      _
    %v40 = vld [vmem:[%s0] sm:$0xf]
    %v41 = vld [vmem:[%s0 + $0x4] sm:$0xf]
    %v42 = vld [vmem:[%s0 + $0x8] sm:$0xf]
    %v43 = vld [vmem:[%s0 + $0xc] sm:$0xf]
    %v44 = vld [vmem:[%s0 + $0x10] sm:$0xf]
    %v45 = vld [vmem:[%s0 + $0x14] sm:$0xf]
    %v46 = vld [vmem:[%s0 + $0x18] sm:$0xf]
    %v47 = vld [vmem:[%s0 + $0x1c] sm:$0xf]
    %v48 = vld [vmem:[%s0 + $0x20] sm:$0xf]
    %v49 = vld [vmem:[%s0 + $0x24] sm:$0xf]
    %v50 = vld [vmem:[%s0 + $0x28] sm:$0xf]
    %v51 = vld [vmem:[%s0 + $0x2c] sm:$0xf]
    %v52 = vld [vmem:[%s0 + $0x30] sm:$0xf]
    %v53 = vld [vmem:[%s0 + $0x34] sm:$0xf]
    %v54 = vld [vmem:[%s0 + $0x38] sm:$0xf]
    %v55 = vld [vmem:[%s0 + $0x3c] sm:$0xf]
    %v56 = vld [vmem:[%s0 + $0x40] sm:$0xf]
    %v57 = vld [vmem:[%s0 + $0x44] sm:$0xf]
    %v58 = vld [vmem:[%s0 + $0x48] sm:$0xf]
    %v59 = vld [vmem:[%s0 + $0x4c] sm:$0xf]
    %v60 = vld [vmem:[%s0 + $0x50] sm:$0xf]
    %v61 = vld [vmem:[%s0 + $0x54] sm:$0xf]
    %v62 = vld [vmem:[%s0 + $0x58] sm:$0xf]
    %v63 = vld [vmem:[%s0 + $0x5c] sm:$0xf]
    %v64 = vld [vmem:[%s0 + $0x60] sm:$0xf]
    %v65 = vld [vmem:[%s0 + $0x64] sm:$0xf]
    %v66 = vld [vmem:[%s0 + $0x68] sm:$0xf]
    %v67 = vld [vmem:[%s0 + $0x6c] sm:$0xf]
    %v68 = vld [vmem:[%s0 + $0x70] sm:$0xf]
    %v69 = vld [vmem:[%s0 + $0x74] sm:$0xf]
    %v70 = vld [vmem:[%s0 + $0x78] sm:$0xf]
    %v71 = vld [vmem:[%s0 + $0x7c] sm:$0xf]
    %v72 = vld [vmem:[%s1] sm:$0xf]
    %v73 = vld [vmem:[%s1 + $0x4] sm:$0xf]
    %v74 = vld [vmem:[%s1 + $0x8] sm:$0xf]
    %v75 = vld [vmem:[%s1 + $0xc] sm:$0xf]
    %v76 = vld [vmem:[%s2] sm:$0x1]
    %v78 = vperm.slane %v76, 0
    %v112 = vunpack.c.l.b16 %v40
    %v113 = vunpack.c.l.b16 %v41
    %v114 = vunpack.c.l.b16 %v42
    %v115 = vunpack.c.l.b16 %v43
    %v116 = vunpack.c.l.b16 %v44
    %v117 = vunpack.c.l.b16 %v45
    %v118 = vunpack.c.l.b16 %v46
    %v119 = vunpack.c.l.b16 %v47
    %v120 = vunpack.c.l.b16 %v48
    %v121 = vunpack.c.l.b16 %v49
    %v122 = vunpack.c.l.b16 %v50
    %v123 = vunpack.c.l.b16 %v51
    %v124 = vunpack.c.l.b16 %v52
    %v125 = vunpack.c.l.b16 %v53
    %v126 = vunpack.c.l.b16 %v54
    %v127 = vunpack.c.l.b16 %v55
    %v128 = vunpack.c.l.b16 %v56
    %v129 = vunpack.c.l.b16 %v57
    %v130 = vunpack.c.l.b16 %v58
    %v131 = vunpack.c.l.b16 %v59
    %v132 = vunpack.c.l.b16 %v60
    %v133 = vunpack.c.l.b16 %v61
    %v134 = vunpack.c.l.b16 %v62
    %v135 = vunpack.c.l.b16 %v63
    %v136 = vunpack.c.l.b16 %v64
    %v137 = vunpack.c.l.b16 %v65
    %v138 = vunpack.c.l.b16 %v66
    %v139 = vunpack.c.l.b16 %v67
    %v140 = vunpack.c.l.b16 %v68
    %v141 = vunpack.c.l.b16 %v69
    %v142 = vunpack.c.l.b16 %v70
    %v143 = vunpack.c.l.b16 %v71
    %v144 = vpack.c.b16 %v113, %v112
    %v145 = vpack.c.b16 %v115, %v114
    %v146 = vpack.c.b16 %v117, %v116
    %v147 = vpack.c.b16 %v119, %v118
    %v148 = vpack.c.b16 %v121, %v120
    %v149 = vpack.c.b16 %v123, %v122
    %v150 = vpack.c.b16 %v125, %v124
    %v151 = vpack.c.b16 %v127, %v126
    %v152 = vpack.c.b16 %v129, %v128
    %v153 = vpack.c.b16 %v131, %v130
    %v154 = vpack.c.b16 %v133, %v132
    %v155 = vpack.c.b16 %v135, %v134
    %v156 = vpack.c.b16 %v137, %v136
    %v157 = vpack.c.b16 %v139, %v138
    %v158 = vpack.c.b16 %v141, %v140
    %v159 = vpack.c.b16 %v143, %v142
    %v164 = vunpack.c.l.b16 %v72
    %v165 = vunpack.c.l.b16 %v73
    %v166 = vunpack.c.l.b16 %v74
    %v167 = vunpack.c.l.b16 %v75
    %v168 = vpack.c.b16 %v165, %v164
    %v169 = vpack.c.b16 %v167, %v166
    %vm172 = vcmask 261120
    %v174 = vsel %vm172, %v144, 0
    %v177 = vsel %vm172, %v145, 0
    %v180 = vsel %vm172, %v146, 0
    %v183 = vsel %vm172, %v147, 0
    %v186 = vsel %vm172, %v148, 0
    %v189 = vsel %vm172, %v149, 0
    %v192 = vsel %vm172, %v150, 0
    %v195 = vsel %vm172, %v151, 0
    %v198 = vsel %vm172, %v152, 0
    %v201 = vsel %vm172, %v153, 0
    %v204 = vsel %vm172, %v154, 0
    %v207 = vsel %vm172, %v155, 0
    %v210 = vsel %vm172, %v156, 0
    %v213 = vsel %vm172, %v157, 0
    %v216 = vsel %vm172, %v158, 0
    %v219 = vsel %vm172, %v159, 0
    %221 = vmatpush.bf16.msra.mxu0 0
    %222 = vmatpush.bf16.msra.mxu0 0
    %223 = vmatpush.bf16.msra.mxu0 0
    %224 = vmatpush.bf16.msra.mxu0 0
    %225 = vmatpush.bf16.msra.mxu0 0
    %226 = vmatpush.bf16.msra.mxu0 0
    %227 = vmatpush.bf16.msra.mxu0 %v169
    %228 = vmatpush.bf16.msra.mxu0 %v168
    %229 = vmatmul.bf16.gmra.mxu0 %v174
    %v230 = vpop.f32.mrf.mxu0
    %v231 = vadd.f32 %v78, %v230
    %v232 = vpop.f32.mrf.mxu0
    %v233 = vadd.f32 %v78, %v232
    %234 = vmatmul.bf16.gmra.mxu0 %v177
    %v235 = vpop.f32.mrf.mxu0
    %v236 = vadd.f32 %v78, %v235
    %v237 = vpop.f32.mrf.mxu0
    %v238 = vadd.f32 %v78, %v237
    %239 = vmatmul.bf16.gmra.mxu0 %v180
    %v240 = vpop.f32.mrf.mxu0
    %v241 = vadd.f32 %v78, %v240
    %v242 = vpop.f32.mrf.mxu0
    %v243 = vadd.f32 %v78, %v242
    %244 = vmatmul.bf16.gmra.mxu0 %v183
    %v245 = vpop.f32.mrf.mxu0
    %v246 = vadd.f32 %v78, %v245
    %v247 = vpop.f32.mrf.mxu0
    %v248 = vadd.f32 %v78, %v247
    %249 = vmatmul.bf16.gmra.mxu0 %v186
    %v250 = vpop.f32.mrf.mxu0
    %v251 = vadd.f32 %v78, %v250
    %v252 = vpop.f32.mrf.mxu0
    %v253 = vadd.f32 %v78, %v252
    %254 = vmatmul.bf16.gmra.mxu0 %v189
    %v255 = vpop.f32.mrf.mxu0
    %v256 = vadd.f32 %v78, %v255
    %v257 = vpop.f32.mrf.mxu0
    %v258 = vadd.f32 %v78, %v257
    %259 = vmatmul.bf16.gmra.mxu0 %v192
    %v260 = vpop.f32.mrf.mxu0
    %v261 = vadd.f32 %v78, %v260
    %v262 = vpop.f32.mrf.mxu0
    %v263 = vadd.f32 %v78, %v262
    %264 = vmatmul.bf16.gmra.mxu0 %v195
    %v265 = vpop.f32.mrf.mxu0
    %v266 = vadd.f32 %v78, %v265
    %v267 = vpop.f32.mrf.mxu0
    %v268 = vadd.f32 %v78, %v267
    %269 = vmatmul.bf16.gmra.mxu0 %v198
    %v270 = vpop.f32.mrf.mxu0
    %v271 = vadd.f32 %v78, %v270
    %v272 = vpop.f32.mrf.mxu0
    %v273 = vadd.f32 %v78, %v272
    %274 = vmatmul.bf16.gmra.mxu0 %v201
    %v275 = vpop.f32.mrf.mxu0
    %v276 = vadd.f32 %v78, %v275
    %v277 = vpop.f32.mrf.mxu0
    %v278 = vadd.f32 %v78, %v277
    %279 = vmatmul.bf16.gmra.mxu0 %v204
    %v280 = vpop.f32.mrf.mxu0
    %v281 = vadd.f32 %v78, %v280
    %v282 = vpop.f32.mrf.mxu0
    %v283 = vadd.f32 %v78, %v282
    %284 = vmatmul.bf16.gmra.mxu0 %v207
    %v285 = vpop.f32.mrf.mxu0
    %v286 = vadd.f32 %v78, %v285
    %v287 = vpop.f32.mrf.mxu0
    %v288 = vadd.f32 %v78, %v287
    %289 = vmatmul.bf16.gmra.mxu0 %v210
    %v290 = vpop.f32.mrf.mxu0
    %v291 = vadd.f32 %v78, %v290
    %v292 = vpop.f32.mrf.mxu0
    %v293 = vadd.f32 %v78, %v292
    %294 = vmatmul.bf16.gmra.mxu0 %v213
    %v295 = vpop.f32.mrf.mxu0
    %v296 = vadd.f32 %v78, %v295
    %v297 = vpop.f32.mrf.mxu0
    %v298 = vadd.f32 %v78, %v297
    %299 = vmatmul.bf16.gmra.mxu0 %v216
    %v300 = vpop.f32.mrf.mxu0
    %v301 = vadd.f32 %v78, %v300
    %v302 = vpop.f32.mrf.mxu0
    %v303 = vadd.f32 %v78, %v302
    %304 = vmatmul.bf16.gmra.mxu0 %v219
    %v305 = vpop.f32.mrf.mxu0
    %v306 = vadd.f32 %v78, %v305
    %v307 = vpop.f32.mrf.mxu0
    %v308 = vadd.f32 %v78, %v307
    %309 = vdwg.mxu0
    %vm310 = vcmp.ge.f32.partialorder %v231, 0.0
    %vm311 = vcmp.ge.f32.partialorder %v233, 0.0
    %vm312 = vcmp.ge.f32.partialorder %v236, 0.0
    %vm313 = vcmp.ge.f32.partialorder %v238, 0.0
    %vm314 = vcmp.ge.f32.partialorder %v241, 0.0
    %vm315 = vcmp.ge.f32.partialorder %v243, 0.0
    %vm316 = vcmp.ge.f32.partialorder %v246, 0.0
    %vm317 = vcmp.ge.f32.partialorder %v248, 0.0
    %vm318 = vcmp.ge.f32.partialorder %v251, 0.0
    %vm319 = vcmp.ge.f32.partialorder %v253, 0.0
    %vm320 = vcmp.ge.f32.partialorder %v256, 0.0
    %vm321 = vcmp.ge.f32.partialorder %v258, 0.0
    %vm322 = vcmp.ge.f32.partialorder %v261, 0.0
    %vm323 = vcmp.ge.f32.partialorder %v263, 0.0
    %vm324 = vcmp.ge.f32.partialorder %v266, 0.0
    %vm325 = vcmp.ge.f32.partialorder %v268, 0.0
    %vm326 = vcmp.ge.f32.partialorder %v271, 0.0
    %vm327 = vcmp.ge.f32.partialorder %v273, 0.0
    %vm328 = vcmp.ge.f32.partialorder %v276, 0.0
    %vm329 = vcmp.ge.f32.partialorder %v278, 0.0
    %vm330 = vcmp.ge.f32.partialorder %v281, 0.0
    %vm331 = vcmp.ge.f32.partialorder %v283, 0.0
    %vm332 = vcmp.ge.f32.partialorder %v286, 0.0
    %vm333 = vcmp.ge.f32.partialorder %v288, 0.0
    %vm334 = vcmp.ge.f32.partialorder %v291, 0.0
    %vm335 = vcmp.ge.f32.partialorder %v293, 0.0
    %vm336 = vcmp.ge.f32.partialorder %v296, 0.0
    %vm337 = vcmp.ge.f32.partialorder %v298, 0.0
    %vm338 = vcmp.ge.f32.partialorder %v301, 0.0
    %vm339 = vcmp.ge.f32.partialorder %v303, 0.0
    %vm340 = vcmp.ge.f32.partialorder %v306, 0.0
    %vm341 = vcmp.ge.f32.partialorder %v308, 0.0
    %v342 = vmul.f32 %v231, 0.2
    %v343 = vmul.f32 %v233, 0.2
    %v344 = vmul.f32 %v236, 0.2
    %v345 = vmul.f32 %v238, 0.2
    %v346 = vmul.f32 %v241, 0.2
    %v347 = vmul.f32 %v243, 0.2
    %v348 = vmul.f32 %v246, 0.2
    %v349 = vmul.f32 %v248, 0.2
    %v350 = vmul.f32 %v251, 0.2
    %v351 = vmul.f32 %v253, 0.2
    %v352 = vmul.f32 %v256, 0.2
    %v353 = vmul.f32 %v258, 0.2
    %v354 = vmul.f32 %v261, 0.2
    %v355 = vmul.f32 %v263, 0.2
    %v356 = vmul.f32 %v266, 0.2
    %v357 = vmul.f32 %v268, 0.2
    %v358 = vmul.f32 %v271, 0.2
    %v359 = vmul.f32 %v273, 0.2
    %v360 = vmul.f32 %v276, 0.2
    %v361 = vmul.f32 %v278, 0.2
    %v362 = vmul.f32 %v281, 0.2
    %v363 = vmul.f32 %v283, 0.2
    %v364 = vmul.f32 %v286, 0.2
    %v365 = vmul.f32 %v288, 0.2
    %v366 = vmul.f32 %v291, 0.2
    %v367 = vmul.f32 %v293, 0.2
    %v368 = vmul.f32 %v296, 0.2
    %v369 = vmul.f32 %v298, 0.2
    %v370 = vmul.f32 %v301, 0.2
    %v371 = vmul.f32 %v303, 0.2
    %v372 = vmul.f32 %v306, 0.2
    %v373 = vmul.f32 %v308, 0.2
    %v374 = vsel %vm310, %v231, %v342
    %v375 = vsel %vm311, %v233, %v343
    %v376 = vsel %vm312, %v236, %v344
    %v377 = vsel %vm313, %v238, %v345
    %v378 = vsel %vm314, %v241, %v346
    %v379 = vsel %vm315, %v243, %v347
    %v380 = vsel %vm316, %v246, %v348
    %v381 = vsel %vm317, %v248, %v349
    %v382 = vsel %vm318, %v251, %v350
    %v383 = vsel %vm319, %v253, %v351
    %v384 = vsel %vm320, %v256, %v352
    %v385 = vsel %vm321, %v258, %v353
    %v386 = vsel %vm322, %v261, %v354
    %v387 = vsel %vm323, %v263, %v355
    %v388 = vsel %vm324, %v266, %v356
    %v389 = vsel %vm325, %v268, %v357
    %v390 = vsel %vm326, %v271, %v358
    %v391 = vsel %vm327, %v273, %v359
    %v392 = vsel %vm328, %v276, %v360
    %v393 = vsel %vm329, %v278, %v361
    %v394 = vsel %vm330, %v281, %v362
    %v395 = vsel %vm331, %v283, %v363
    %v396 = vsel %vm332, %v286, %v364
    %v397 = vsel %vm333, %v288, %v365
    %v398 = vsel %vm334, %v291, %v366
    %v399 = vsel %vm335, %v293, %v367
    %v400 = vsel %vm336, %v296, %v368
    %v401 = vsel %vm337, %v298, %v369
    %v402 = vsel %vm338, %v301, %v370
    %v403 = vsel %vm339, %v303, %v371
    %v404 = vsel %vm340, %v306, %v372
    %v405 = vsel %vm341, %v308, %v373
    %v406 = vpack.c.bf16 %v375, %v374
    %v407 = vpack.c.bf16 %v377, %v376
    %v408 = vpack.c.bf16 %v379, %v378
    %v409 = vpack.c.bf16 %v381, %v380
    %v410 = vpack.c.bf16 %v383, %v382
    %v411 = vpack.c.bf16 %v385, %v384
    %v412 = vpack.c.bf16 %v387, %v386
    %v413 = vpack.c.bf16 %v389, %v388
    %v414 = vpack.c.bf16 %v391, %v390
    %v415 = vpack.c.bf16 %v393, %v392
    %v416 = vpack.c.bf16 %v395, %v394
    %v417 = vpack.c.bf16 %v397, %v396
    %v418 = vpack.c.bf16 %v399, %v398
    %v419 = vpack.c.bf16 %v401, %v400
    %v420 = vpack.c.bf16 %v403, %v402
    %v421 = vpack.c.bf16 %v405, %v404
    %v422 = vld [vmem:[%s3] sm:$0xf]
    %v423 = vld [vmem:[%s3 + $0x4] sm:$0xf]
    %v424 = vld [vmem:[%s3 + $0x8] sm:$0xf]
    %v425 = vld [vmem:[%s3 + $0xc] sm:$0xf]
    %v426 = vld [vmem:[%s3 + $0x10] sm:$0xf]
    %v427 = vld [vmem:[%s3 + $0x14] sm:$0xf]
    %v428 = vld [vmem:[%s3 + $0x18] sm:$0xf]
    %v429 = vld [vmem:[%s3 + $0x1c] sm:$0xf]
    %v430 = vld [vmem:[%s4] sm:$0x1]
    %v432 = vperm.slane %v430, 0
    %v442 = vunpack.c.l.b16 %v422
    %v443 = vunpack.c.l.b16 %v423
    %v444 = vunpack.c.l.b16 %v424
    %v445 = vunpack.c.l.b16 %v425
    %v446 = vunpack.c.l.b16 %v426
    %v447 = vunpack.c.l.b16 %v427
    %v448 = vunpack.c.l.b16 %v428
    %v449 = vunpack.c.l.b16 %v429
    %v450 = vpack.c.b16 %v443, %v442
    %v451 = vpack.c.b16 %v445, %v444
    %v452 = vpack.c.b16 %v447, %v446
    %v453 = vpack.c.b16 %v449, %v448
    %vm458 = vcmask 523264
    %v460 = vsel %vm458, %v406, 0
    %v463 = vsel %vm458, %v407, 0
    %v466 = vsel %vm458, %v408, 0
    %v469 = vsel %vm458, %v409, 0
    %v472 = vsel %vm458, %v410, 0
    %v475 = vsel %vm458, %v411, 0
    %v478 = vsel %vm458, %v412, 0
    %v481 = vsel %vm458, %v413, 0
    %v484 = vsel %vm458, %v414, 0
    %v487 = vsel %vm458, %v415, 0
    %v490 = vsel %vm458, %v416, 0
    %v493 = vsel %vm458, %v417, 0
    %v496 = vsel %vm458, %v418, 0
    %v499 = vsel %vm458, %v419, 0
    %v502 = vsel %vm458, %v420, 0
    %v505 = vsel %vm458, %v421, 0
    %507 = vmatpush.bf16.msra.mxu0 0
    %508 = vmatpush.bf16.msra.mxu0 0
    %509 = vmatpush.bf16.msra.mxu0 0
    %510 = vmatpush.bf16.msra.mxu0 0
    %511 = vmatpush.bf16.msra.mxu0 %v453
    %512 = vmatpush.bf16.msra.mxu0 %v452
    %513 = vmatpush.bf16.msra.mxu0 %v451
    %514 = vmatpush.bf16.msra.mxu0 %v450
    %515 = vmatmul.bf16.gmra.mxu0 %v460
    %v516 = vpop.f32.mrf.mxu0
    %v517 = vadd.f32 %v432, %v516
    %v518 = vpop.f32.mrf.mxu0
    %v519 = vadd.f32 %v432, %v518
    %520 = vmatmul.bf16.gmra.mxu0 %v463
    %v521 = vpop.f32.mrf.mxu0
    %v522 = vadd.f32 %v432, %v521
    %v523 = vpop.f32.mrf.mxu0
    %v524 = vadd.f32 %v432, %v523
    %525 = vmatmul.bf16.gmra.mxu0 %v466
    %v526 = vpop.f32.mrf.mxu0
    %v527 = vadd.f32 %v432, %v526
    %v528 = vpop.f32.mrf.mxu0
    %v529 = vadd.f32 %v432, %v528
    %530 = vmatmul.bf16.gmra.mxu0 %v469
    %v531 = vpop.f32.mrf.mxu0
    %v532 = vadd.f32 %v432, %v531
    %v533 = vpop.f32.mrf.mxu0
    %v534 = vadd.f32 %v432, %v533
    %535 = vmatmul.bf16.gmra.mxu0 %v472
    %v536 = vpop.f32.mrf.mxu0
    %v537 = vadd.f32 %v432, %v536
    %v538 = vpop.f32.mrf.mxu0
    %v539 = vadd.f32 %v432, %v538
    %540 = vmatmul.bf16.gmra.mxu0 %v475
    %v541 = vpop.f32.mrf.mxu0
    %v542 = vadd.f32 %v432, %v541
    %v543 = vpop.f32.mrf.mxu0
    %v544 = vadd.f32 %v432, %v543
    %545 = vmatmul.bf16.gmra.mxu0 %v478
    %v546 = vpop.f32.mrf.mxu0
    %v547 = vadd.f32 %v432, %v546
    %v548 = vpop.f32.mrf.mxu0
    %v549 = vadd.f32 %v432, %v548
    %550 = vmatmul.bf16.gmra.mxu0 %v481
    %v551 = vpop.f32.mrf.mxu0
    %v552 = vadd.f32 %v432, %v551
    %v553 = vpop.f32.mrf.mxu0
    %v554 = vadd.f32 %v432, %v553
    %555 = vmatmul.bf16.gmra.mxu0 %v484
    %v556 = vpop.f32.mrf.mxu0
    %v557 = vadd.f32 %v432, %v556
    %v558 = vpop.f32.mrf.mxu0
    %v559 = vadd.f32 %v432, %v558
    %560 = vmatmul.bf16.gmra.mxu0 %v487
    %v561 = vpop.f32.mrf.mxu0
    %v562 = vadd.f32 %v432, %v561
    %v563 = vpop.f32.mrf.mxu0
    %v564 = vadd.f32 %v432, %v563
    %565 = vmatmul.bf16.gmra.mxu0 %v490
    %v566 = vpop.f32.mrf.mxu0
    %v567 = vadd.f32 %v432, %v566
    %v568 = vpop.f32.mrf.mxu0
    %v569 = vadd.f32 %v432, %v568
    %570 = vmatmul.bf16.gmra.mxu0 %v493
    %v571 = vpop.f32.mrf.mxu0
    %v572 = vadd.f32 %v432, %v571
    %v573 = vpop.f32.mrf.mxu0
    %v574 = vadd.f32 %v432, %v573
    %575 = vmatmul.bf16.gmra.mxu0 %v496
    %v576 = vpop.f32.mrf.mxu0
    %v577 = vadd.f32 %v432, %v576
    %v578 = vpop.f32.mrf.mxu0
    %v579 = vadd.f32 %v432, %v578
    %580 = vmatmul.bf16.gmra.mxu0 %v499
    %v581 = vpop.f32.mrf.mxu0
    %v582 = vadd.f32 %v432, %v581
    %v583 = vpop.f32.mrf.mxu0
    %v584 = vadd.f32 %v432, %v583
    %585 = vmatmul.bf16.gmra.mxu0 %v502
    %v586 = vpop.f32.mrf.mxu0
    %v587 = vadd.f32 %v432, %v586
    %v588 = vpop.f32.mrf.mxu0
    %v589 = vadd.f32 %v432, %v588
    %590 = vmatmul.bf16.gmra.mxu0 %v505
    %v591 = vpop.f32.mrf.mxu0
    %v592 = vadd.f32 %v432, %v591
    %v593 = vpop.f32.mrf.mxu0
    %v594 = vadd.f32 %v432, %v593
    %595 = vdwg.mxu0
    %vm596 = vcmp.ge.f32.partialorder %v517, 0.0
    %vm597 = vcmp.ge.f32.partialorder %v519, 0.0
    %vm598 = vcmp.ge.f32.partialorder %v522, 0.0
    %vm599 = vcmp.ge.f32.partialorder %v524, 0.0
    %vm600 = vcmp.ge.f32.partialorder %v527, 0.0
    %vm601 = vcmp.ge.f32.partialorder %v529, 0.0
    %vm602 = vcmp.ge.f32.partialorder %v532, 0.0
    %vm603 = vcmp.ge.f32.partialorder %v534, 0.0
    %vm604 = vcmp.ge.f32.partialorder %v537, 0.0
    %vm605 = vcmp.ge.f32.partialorder %v539, 0.0
    %vm606 = vcmp.ge.f32.partialorder %v542, 0.0
    %vm607 = vcmp.ge.f32.partialorder %v544, 0.0
    %vm608 = vcmp.ge.f32.partialorder %v547, 0.0
    %vm609 = vcmp.ge.f32.partialorder %v549, 0.0
    %vm610 = vcmp.ge.f32.partialorder %v552, 0.0
    %vm611 = vcmp.ge.f32.partialorder %v554, 0.0
    %vm612 = vcmp.ge.f32.partialorder %v557, 0.0
    %vm613 = vcmp.ge.f32.partialorder %v559, 0.0
    %vm614 = vcmp.ge.f32.partialorder %v562, 0.0
    %vm615 = vcmp.ge.f32.partialorder %v564, 0.0
    %vm616 = vcmp.ge.f32.partialorder %v567, 0.0
    %vm617 = vcmp.ge.f32.partialorder %v569, 0.0
    %vm618 = vcmp.ge.f32.partialorder %v572, 0.0
    %vm619 = vcmp.ge.f32.partialorder %v574, 0.0
    %vm620 = vcmp.ge.f32.partialorder %v577, 0.0
    %vm621 = vcmp.ge.f32.partialorder %v579, 0.0
    %vm622 = vcmp.ge.f32.partialorder %v582, 0.0
    %vm623 = vcmp.ge.f32.partialorder %v584, 0.0
    %vm624 = vcmp.ge.f32.partialorder %v587, 0.0
    %vm625 = vcmp.ge.f32.partialorder %v589, 0.0
    %vm626 = vcmp.ge.f32.partialorder %v592, 0.0
    %vm627 = vcmp.ge.f32.partialorder %v594, 0.0
    %v628 = vmul.f32 %v517, 0.2
    %v629 = vmul.f32 %v519, 0.2
    %v630 = vmul.f32 %v522, 0.2
    %v631 = vmul.f32 %v524, 0.2
    %v632 = vmul.f32 %v527, 0.2
    %v633 = vmul.f32 %v529, 0.2
    %v634 = vmul.f32 %v532, 0.2
    %v635 = vmul.f32 %v534, 0.2
    %v636 = vmul.f32 %v537, 0.2
    %v637 = vmul.f32 %v539, 0.2
    %v638 = vmul.f32 %v542, 0.2
    %v639 = vmul.f32 %v544, 0.2
    %v640 = vmul.f32 %v547, 0.2
    %v641 = vmul.f32 %v549, 0.2
    %v642 = vmul.f32 %v552, 0.2
    %v643 = vmul.f32 %v554, 0.2
    %v644 = vmul.f32 %v557, 0.2
    %v645 = vmul.f32 %v559, 0.2
    %v646 = vmul.f32 %v562, 0.2
    %v647 = vmul.f32 %v564, 0.2
    %v648 = vmul.f32 %v567, 0.2
    %v649 = vmul.f32 %v569, 0.2
    %v650 = vmul.f32 %v572, 0.2
    %v651 = vmul.f32 %v574, 0.2
    %v652 = vmul.f32 %v577, 0.2
    %v653 = vmul.f32 %v579, 0.2
    %v654 = vmul.f32 %v582, 0.2
    %v655 = vmul.f32 %v584, 0.2
    %v656 = vmul.f32 %v587, 0.2
    %v657 = vmul.f32 %v589, 0.2
    %v658 = vmul.f32 %v592, 0.2
    %v659 = vmul.f32 %v594, 0.2
    %v660 = vsel %vm596, %v517, %v628
    %v661 = vsel %vm597, %v519, %v629
    %v662 = vsel %vm598, %v522, %v630
    %v663 = vsel %vm599, %v524, %v631
    %v664 = vsel %vm600, %v527, %v632
    %v665 = vsel %vm601, %v529, %v633
    %v666 = vsel %vm602, %v532, %v634
    %v667 = vsel %vm603, %v534, %v635
    %v668 = vsel %vm604, %v537, %v636
    %v669 = vsel %vm605, %v539, %v637
    %v670 = vsel %vm606, %v542, %v638
    %v671 = vsel %vm607, %v544, %v639
    %v672 = vsel %vm608, %v547, %v640
    %v673 = vsel %vm609, %v549, %v641
    %v674 = vsel %vm610, %v552, %v642
    %v675 = vsel %vm611, %v554, %v643
    %v676 = vsel %vm612, %v557, %v644
    %v677 = vsel %vm613, %v559, %v645
    %v678 = vsel %vm614, %v562, %v646
    %v679 = vsel %vm615, %v564, %v647
    %v680 = vsel %vm616, %v567, %v648
    %v681 = vsel %vm617, %v569, %v649
    %v682 = vsel %vm618, %v572, %v650
    %v683 = vsel %vm619, %v574, %v651
    %v684 = vsel %vm620, %v577, %v652
    %v685 = vsel %vm621, %v579, %v653
    %v686 = vsel %vm622, %v582, %v654
    %v687 = vsel %vm623, %v584, %v655
    %v688 = vsel %vm624, %v587, %v656
    %v689 = vsel %vm625, %v589, %v657
    %v690 = vsel %vm626, %v592, %v658
    %v691 = vsel %vm627, %v594, %v659
    %v692 = vpack.c.bf16 %v661, %v660
    %v693 = vpack.c.bf16 %v663, %v662
    %v694 = vpack.c.bf16 %v665, %v664
    %v695 = vpack.c.bf16 %v667, %v666
    %v696 = vpack.c.bf16 %v669, %v668
    %v697 = vpack.c.bf16 %v671, %v670
    %v698 = vpack.c.bf16 %v673, %v672
    %v699 = vpack.c.bf16 %v675, %v674
    %v700 = vpack.c.bf16 %v677, %v676
    %v701 = vpack.c.bf16 %v679, %v678
    %v702 = vpack.c.bf16 %v681, %v680
    %v703 = vpack.c.bf16 %v683, %v682
    %v704 = vpack.c.bf16 %v685, %v684
    %v705 = vpack.c.bf16 %v687, %v686
    %v706 = vpack.c.bf16 %v689, %v688
    %v707 = vpack.c.bf16 %v691, %v690
    %v708 = vld [vmem:[%s5] sm:$0xf]
    %v709 = vld [vmem:[%s5 + $0x4] sm:$0xf]
    %v710 = vld [vmem:[%s5 + $0x8] sm:$0xf]
    %v711 = vld [vmem:[%s5 + $0xc] sm:$0xf]
    %v712 = vld [vmem:[%s6] sm:$0x1]
    %v714 = vperm.slane %v712, 0
    %v720 = vunpack.c.l.b16 %v708
    %v721 = vunpack.c.l.b16 %v709
    %v722 = vunpack.c.l.b16 %v710
    %v723 = vunpack.c.l.b16 %v711
    %v724 = vpack.c.b16 %v721, %v720
    %v725 = vpack.c.b16 %v723, %v722
    %v729 = vsel %vm172, %v692, 0
    %v732 = vsel %vm172, %v693, 0
    %v735 = vsel %vm172, %v694, 0
    %v738 = vsel %vm172, %v695, 0
    %v741 = vsel %vm172, %v696, 0
    %v744 = vsel %vm172, %v697, 0
    %v747 = vsel %vm172, %v698, 0
    %v750 = vsel %vm172, %v699, 0
    %v753 = vsel %vm172, %v700, 0
    %v756 = vsel %vm172, %v701, 0
    %v759 = vsel %vm172, %v702, 0
    %v762 = vsel %vm172, %v703, 0
    %v765 = vsel %vm172, %v704, 0
    %v768 = vsel %vm172, %v705, 0
    %v771 = vsel %vm172, %v706, 0
    %v774 = vsel %vm172, %v707, 0
    %776 = vmatpush.bf16.msra.mxu0 0
    %777 = vmatpush.bf16.msra.mxu0 0
    %778 = vmatpush.bf16.msra.mxu0 0
    %779 = vmatpush.bf16.msra.mxu0 0
    %780 = vmatpush.bf16.msra.mxu0 0
    %781 = vmatpush.bf16.msra.mxu0 0
    %782 = vmatpush.bf16.msra.mxu0 %v725
    %783 = vmatpush.bf16.msra.mxu0 %v724
    %784 = vmatmul.bf16.gmra.mxu0 %v729
    %v785 = vpop.f32.mrf.mxu0
    %v786 = vadd.f32 %v714, %v785
    %v787 = vpop.f32.mrf.mxu0
    %v788 = vadd.f32 %v714, %v787
    %789 = vmatmul.bf16.gmra.mxu0 %v732
    %v790 = vpop.f32.mrf.mxu0
    %v791 = vadd.f32 %v714, %v790
    %v792 = vpop.f32.mrf.mxu0
    %v793 = vadd.f32 %v714, %v792
    %794 = vmatmul.bf16.gmra.mxu0 %v735
    %v795 = vpop.f32.mrf.mxu0
    %v796 = vadd.f32 %v714, %v795
    %v797 = vpop.f32.mrf.mxu0
    %v798 = vadd.f32 %v714, %v797
    %799 = vmatmul.bf16.gmra.mxu0 %v738
    %v800 = vpop.f32.mrf.mxu0
    %v801 = vadd.f32 %v714, %v800
    %v802 = vpop.f32.mrf.mxu0
    %v803 = vadd.f32 %v714, %v802
    %804 = vmatmul.bf16.gmra.mxu0 %v741
    %v805 = vpop.f32.mrf.mxu0
    %v806 = vadd.f32 %v714, %v805
    %v807 = vpop.f32.mrf.mxu0
    %v808 = vadd.f32 %v714, %v807
    %809 = vmatmul.bf16.gmra.mxu0 %v744
    %v810 = vpop.f32.mrf.mxu0
    %v811 = vadd.f32 %v714, %v810
    %v812 = vpop.f32.mrf.mxu0
    %v813 = vadd.f32 %v714, %v812
    %814 = vmatmul.bf16.gmra.mxu0 %v747
    %v815 = vpop.f32.mrf.mxu0
    %v816 = vadd.f32 %v714, %v815
    %v817 = vpop.f32.mrf.mxu0
    %v818 = vadd.f32 %v714, %v817
    %819 = vmatmul.bf16.gmra.mxu0 %v750
    %v820 = vpop.f32.mrf.mxu0
    %v821 = vadd.f32 %v714, %v820
    %v822 = vpop.f32.mrf.mxu0
    %v823 = vadd.f32 %v714, %v822
    %824 = vmatmul.bf16.gmra.mxu0 %v753
    %v825 = vpop.f32.mrf.mxu0
    %v826 = vadd.f32 %v714, %v825
    %v827 = vpop.f32.mrf.mxu0
    %v828 = vadd.f32 %v714, %v827
    %829 = vmatmul.bf16.gmra.mxu0 %v756
    %v830 = vpop.f32.mrf.mxu0
    %v831 = vadd.f32 %v714, %v830
    %v832 = vpop.f32.mrf.mxu0
    %v833 = vadd.f32 %v714, %v832
    %834 = vmatmul.bf16.gmra.mxu0 %v759
    %v835 = vpop.f32.mrf.mxu0
    %v836 = vadd.f32 %v714, %v835
    %v837 = vpop.f32.mrf.mxu0
    %v838 = vadd.f32 %v714, %v837
    %839 = vmatmul.bf16.gmra.mxu0 %v762
    %v840 = vpop.f32.mrf.mxu0
    %v841 = vadd.f32 %v714, %v840
    %v842 = vpop.f32.mrf.mxu0
    %v843 = vadd.f32 %v714, %v842
    %844 = vmatmul.bf16.gmra.mxu0 %v765
    %v845 = vpop.f32.mrf.mxu0
    %v846 = vadd.f32 %v714, %v845
    %v847 = vpop.f32.mrf.mxu0
    %v848 = vadd.f32 %v714, %v847
    %849 = vmatmul.bf16.gmra.mxu0 %v768
    %v850 = vpop.f32.mrf.mxu0
    %v851 = vadd.f32 %v714, %v850
    %v852 = vpop.f32.mrf.mxu0
    %v853 = vadd.f32 %v714, %v852
    %854 = vmatmul.bf16.gmra.mxu0 %v771
    %v855 = vpop.f32.mrf.mxu0
    %v856 = vadd.f32 %v714, %v855
    %v857 = vpop.f32.mrf.mxu0
    %v858 = vadd.f32 %v714, %v857
    %859 = vmatmul.bf16.gmra.mxu0 %v774
    %v860 = vpop.f32.mrf.mxu0
    %v861 = vadd.f32 %v714, %v860
    %v862 = vpop.f32.mrf.mxu0
    %v863 = vadd.f32 %v714, %v862
    %864 = vdwg.mxu0
    %vm865 = vcmp.ge.f32.partialorder %v786, 0.0
    %vm866 = vcmp.ge.f32.partialorder %v788, 0.0
    %vm867 = vcmp.ge.f32.partialorder %v791, 0.0
    %vm868 = vcmp.ge.f32.partialorder %v793, 0.0
    %vm869 = vcmp.ge.f32.partialorder %v796, 0.0
    %vm870 = vcmp.ge.f32.partialorder %v798, 0.0
    %vm871 = vcmp.ge.f32.partialorder %v801, 0.0
    %vm872 = vcmp.ge.f32.partialorder %v803, 0.0
    %vm873 = vcmp.ge.f32.partialorder %v806, 0.0
    %vm874 = vcmp.ge.f32.partialorder %v808, 0.0
    %vm875 = vcmp.ge.f32.partialorder %v811, 0.0
    %vm876 = vcmp.ge.f32.partialorder %v813, 0.0
    %vm877 = vcmp.ge.f32.partialorder %v816, 0.0
    %vm878 = vcmp.ge.f32.partialorder %v818, 0.0
    %vm879 = vcmp.ge.f32.partialorder %v821, 0.0
    %vm880 = vcmp.ge.f32.partialorder %v823, 0.0
    %vm881 = vcmp.ge.f32.partialorder %v826, 0.0
    %vm882 = vcmp.ge.f32.partialorder %v828, 0.0
    %vm883 = vcmp.ge.f32.partialorder %v831, 0.0
    %vm884 = vcmp.ge.f32.partialorder %v833, 0.0
    %vm885 = vcmp.ge.f32.partialorder %v836, 0.0
    %vm886 = vcmp.ge.f32.partialorder %v838, 0.0
    %vm887 = vcmp.ge.f32.partialorder %v841, 0.0
    %vm888 = vcmp.ge.f32.partialorder %v843, 0.0
    %vm889 = vcmp.ge.f32.partialorder %v846, 0.0
    %vm890 = vcmp.ge.f32.partialorder %v848, 0.0
    %vm891 = vcmp.ge.f32.partialorder %v851, 0.0
    %vm892 = vcmp.ge.f32.partialorder %v853, 0.0
    %vm893 = vcmp.ge.f32.partialorder %v856, 0.0
    %vm894 = vcmp.ge.f32.partialorder %v858, 0.0
    %vm895 = vcmp.ge.f32.partialorder %v861, 0.0
    %vm896 = vcmp.ge.f32.partialorder %v863, 0.0
    %v897 = vmul.f32 %v786, 0.2
    %v898 = vmul.f32 %v788, 0.2
    %v899 = vmul.f32 %v791, 0.2
    %v900 = vmul.f32 %v793, 0.2
    %v901 = vmul.f32 %v796, 0.2
    %v902 = vmul.f32 %v798, 0.2
    %v903 = vmul.f32 %v801, 0.2
    %v904 = vmul.f32 %v803, 0.2
    %v905 = vmul.f32 %v806, 0.2
    %v906 = vmul.f32 %v808, 0.2
    %v907 = vmul.f32 %v811, 0.2
    %v908 = vmul.f32 %v813, 0.2
    %v909 = vmul.f32 %v816, 0.2
    %v910 = vmul.f32 %v818, 0.2
    %v911 = vmul.f32 %v821, 0.2
    %v912 = vmul.f32 %v823, 0.2
    %v913 = vmul.f32 %v826, 0.2
    %v914 = vmul.f32 %v828, 0.2
    %v915 = vmul.f32 %v831, 0.2
    %v916 = vmul.f32 %v833, 0.2
    %v917 = vmul.f32 %v836, 0.2
    %v918 = vmul.f32 %v838, 0.2
    %v919 = vmul.f32 %v841, 0.2
    %v920 = vmul.f32 %v843, 0.2
    %v921 = vmul.f32 %v846, 0.2
    %v922 = vmul.f32 %v848, 0.2
    %v923 = vmul.f32 %v851, 0.2
    %v924 = vmul.f32 %v853, 0.2
    %v925 = vmul.f32 %v856, 0.2
    %v926 = vmul.f32 %v858, 0.2
    %v927 = vmul.f32 %v861, 0.2
    %v928 = vmul.f32 %v863, 0.2
    %v929 = vsel %vm865, %v786, %v897
    %v930 = vsel %vm866, %v788, %v898
    %v931 = vsel %vm867, %v791, %v899
    %v932 = vsel %vm868, %v793, %v900
    %v933 = vsel %vm869, %v796, %v901
    %v934 = vsel %vm870, %v798, %v902
    %v935 = vsel %vm871, %v801, %v903
    %v936 = vsel %vm872, %v803, %v904
    %v937 = vsel %vm873, %v806, %v905
    %v938 = vsel %vm874, %v808, %v906
    %v939 = vsel %vm875, %v811, %v907
    %v940 = vsel %vm876, %v813, %v908
    %v941 = vsel %vm877, %v816, %v909
    %v942 = vsel %vm878, %v818, %v910
    %v943 = vsel %vm879, %v821, %v911
    %v944 = vsel %vm880, %v823, %v912
    %v945 = vsel %vm881, %v826, %v913
    %v946 = vsel %vm882, %v828, %v914
    %v947 = vsel %vm883, %v831, %v915
    %v948 = vsel %vm884, %v833, %v916
    %v949 = vsel %vm885, %v836, %v917
    %v950 = vsel %vm886, %v838, %v918
    %v951 = vsel %vm887, %v841, %v919
    %v952 = vsel %vm888, %v843, %v920
    %v953 = vsel %vm889, %v846, %v921
    %v954 = vsel %vm890, %v848, %v922
    %v955 = vsel %vm891, %v851, %v923
    %v956 = vsel %vm892, %v853, %v924
    %v957 = vsel %vm893, %v856, %v925
    %v958 = vsel %vm894, %v858, %v926
    %v959 = vsel %vm895, %v861, %v927
    %v960 = vsel %vm896, %v863, %v928
    %v961 = vpack.c.bf16 %v930, %v929
    %v962 = vpack.c.bf16 %v932, %v931
    %v963 = vpack.c.bf16 %v934, %v933
    %v964 = vpack.c.bf16 %v936, %v935
    %v965 = vpack.c.bf16 %v938, %v937
    %v966 = vpack.c.bf16 %v940, %v939
    %v967 = vpack.c.bf16 %v942, %v941
    %v968 = vpack.c.bf16 %v944, %v943
    %v969 = vpack.c.bf16 %v946, %v945
    %v970 = vpack.c.bf16 %v948, %v947
    %v971 = vpack.c.bf16 %v950, %v949
    %v972 = vpack.c.bf16 %v952, %v951
    %v973 = vpack.c.bf16 %v954, %v953
    %v974 = vpack.c.bf16 %v956, %v955
    %v975 = vpack.c.bf16 %v958, %v957
    %v976 = vpack.c.bf16 %v960, %v959
    %v977 = vld [vmem:[%s7] sm:$0xf]
    %v978 = vld [vmem:[%s7 + $0x4] sm:$0xf]
    %v979 = vld [vmem:[%s7 + $0x8] sm:$0xf]
    %v980 = vld [vmem:[%s7 + $0xc] sm:$0xf]
    %v981 = vld [vmem:[%s8] sm:$0x1]
    %v983 = vperm.slane %v981, 0
    %v989 = vunpack.c.l.b16 %v977
    %v990 = vunpack.c.l.b16 %v978
    %v991 = vunpack.c.l.b16 %v979
    %v992 = vunpack.c.l.b16 %v980
    %v993 = vpack.c.b16 %v990, %v989
    %v994 = vpack.c.b16 %v992, %v991
    %v998 = vsel %vm172, %v961, 0
    %v1001 = vsel %vm172, %v962, 0
    %v1004 = vsel %vm172, %v963, 0
    %v1007 = vsel %vm172, %v964, 0
    %v1010 = vsel %vm172, %v965, 0
    %v1013 = vsel %vm172, %v966, 0
    %v1016 = vsel %vm172, %v967, 0
    %v1019 = vsel %vm172, %v968, 0
    %v1022 = vsel %vm172, %v969, 0
    %v1025 = vsel %vm172, %v970, 0
    %v1028 = vsel %vm172, %v971, 0
    %v1031 = vsel %vm172, %v972, 0
    %v1034 = vsel %vm172, %v973, 0
    %v1037 = vsel %vm172, %v974, 0
    %v1040 = vsel %vm172, %v975, 0
    %v1043 = vsel %vm172, %v976, 0
    %1045 = vmatpush.bf16.msra.mxu0 0
    %1046 = vmatpush.bf16.msra.mxu0 0
    %1047 = vmatpush.bf16.msra.mxu0 0
    %1048 = vmatpush.bf16.msra.mxu0 0
    %1049 = vmatpush.bf16.msra.mxu0 0
    %1050 = vmatpush.bf16.msra.mxu0 0
    %1051 = vmatpush.bf16.msra.mxu0 %v994
    %1052 = vmatpush.bf16.msra.mxu0 %v993
    %1053 = vmatmul.bf16.gmra.mxu0 %v998
    %v1054 = vpop.f32.mrf.mxu0
    %v1055 = vadd.f32 %v983, %v1054
    %v1056 = vpop.f32.mrf.mxu0
    %v1057 = vadd.f32 %v983, %v1056
    %1058 = vmatmul.bf16.gmra.mxu0 %v1001
    %v1059 = vpop.f32.mrf.mxu0
    %v1060 = vadd.f32 %v983, %v1059
    %v1061 = vpop.f32.mrf.mxu0
    %v1062 = vadd.f32 %v983, %v1061
    %1063 = vmatmul.bf16.gmra.mxu0 %v1004
    %v1064 = vpop.f32.mrf.mxu0
    %v1065 = vadd.f32 %v983, %v1064
    %v1066 = vpop.f32.mrf.mxu0
    %v1067 = vadd.f32 %v983, %v1066
    %1068 = vmatmul.bf16.gmra.mxu0 %v1007
    %v1069 = vpop.f32.mrf.mxu0
    %v1070 = vadd.f32 %v983, %v1069
    %v1071 = vpop.f32.mrf.mxu0
    %v1072 = vadd.f32 %v983, %v1071
    %1073 = vmatmul.bf16.gmra.mxu0 %v1010
    %v1074 = vpop.f32.mrf.mxu0
    %v1075 = vadd.f32 %v983, %v1074
    %v1076 = vpop.f32.mrf.mxu0
    %v1077 = vadd.f32 %v983, %v1076
    %1078 = vmatmul.bf16.gmra.mxu0 %v1013
    %v1079 = vpop.f32.mrf.mxu0
    %v1080 = vadd.f32 %v983, %v1079
    %v1081 = vpop.f32.mrf.mxu0
    %v1082 = vadd.f32 %v983, %v1081
    %1083 = vmatmul.bf16.gmra.mxu0 %v1016
    %v1084 = vpop.f32.mrf.mxu0
    %v1085 = vadd.f32 %v983, %v1084
    %v1086 = vpop.f32.mrf.mxu0
    %v1087 = vadd.f32 %v983, %v1086
    %1088 = vmatmul.bf16.gmra.mxu0 %v1019
    %v1089 = vpop.f32.mrf.mxu0
    %v1090 = vadd.f32 %v983, %v1089
    %v1091 = vpop.f32.mrf.mxu0
    %v1092 = vadd.f32 %v983, %v1091
    %1093 = vmatmul.bf16.gmra.mxu0 %v1022
    %v1094 = vpop.f32.mrf.mxu0
    %v1095 = vadd.f32 %v983, %v1094
    %v1096 = vpop.f32.mrf.mxu0
    %v1097 = vadd.f32 %v983, %v1096
    %1098 = vmatmul.bf16.gmra.mxu0 %v1025
    %v1099 = vpop.f32.mrf.mxu0
    %v1100 = vadd.f32 %v983, %v1099
    %v1101 = vpop.f32.mrf.mxu0
    %v1102 = vadd.f32 %v983, %v1101
    %1103 = vmatmul.bf16.gmra.mxu0 %v1028
    %v1104 = vpop.f32.mrf.mxu0
    %v1105 = vadd.f32 %v983, %v1104
    %v1106 = vpop.f32.mrf.mxu0
    %v1107 = vadd.f32 %v983, %v1106
    %1108 = vmatmul.bf16.gmra.mxu0 %v1031
    %v1109 = vpop.f32.mrf.mxu0
    %v1110 = vadd.f32 %v983, %v1109
    %v1111 = vpop.f32.mrf.mxu0
    %v1112 = vadd.f32 %v983, %v1111
    %1113 = vmatmul.bf16.gmra.mxu0 %v1034
    %v1114 = vpop.f32.mrf.mxu0
    %v1115 = vadd.f32 %v983, %v1114
    %v1116 = vpop.f32.mrf.mxu0
    %v1117 = vadd.f32 %v983, %v1116
    %1118 = vmatmul.bf16.gmra.mxu0 %v1037
    %v1119 = vpop.f32.mrf.mxu0
    %v1120 = vadd.f32 %v983, %v1119
    %v1121 = vpop.f32.mrf.mxu0
    %v1122 = vadd.f32 %v983, %v1121
    %1123 = vmatmul.bf16.gmra.mxu0 %v1040
    %v1124 = vpop.f32.mrf.mxu0
    %v1125 = vadd.f32 %v983, %v1124
    %v1126 = vpop.f32.mrf.mxu0
    %v1127 = vadd.f32 %v983, %v1126
    %1128 = vmatmul.bf16.gmra.mxu0 %v1043
    %v1129 = vpop.f32.mrf.mxu0
    %v1130 = vadd.f32 %v983, %v1129
    %v1131 = vpop.f32.mrf.mxu0
    %v1132 = vadd.f32 %v983, %v1131
    %1133 = vdwg.mxu0
    %vm1134 = vcmp.ge.f32.partialorder %v1055, 0.0
    %vm1135 = vcmp.ge.f32.partialorder %v1057, 0.0
    %vm1136 = vcmp.ge.f32.partialorder %v1060, 0.0
    %vm1137 = vcmp.ge.f32.partialorder %v1062, 0.0
    %vm1138 = vcmp.ge.f32.partialorder %v1065, 0.0
    %vm1139 = vcmp.ge.f32.partialorder %v1067, 0.0
    %vm1140 = vcmp.ge.f32.partialorder %v1070, 0.0
    %vm1141 = vcmp.ge.f32.partialorder %v1072, 0.0
    %vm1142 = vcmp.ge.f32.partialorder %v1075, 0.0
    %vm1143 = vcmp.ge.f32.partialorder %v1077, 0.0
    %vm1144 = vcmp.ge.f32.partialorder %v1080, 0.0
    %vm1145 = vcmp.ge.f32.partialorder %v1082, 0.0
    %vm1146 = vcmp.ge.f32.partialorder %v1085, 0.0
    %vm1147 = vcmp.ge.f32.partialorder %v1087, 0.0
    %vm1148 = vcmp.ge.f32.partialorder %v1090, 0.0
    %vm1149 = vcmp.ge.f32.partialorder %v1092, 0.0
    %vm1150 = vcmp.ge.f32.partialorder %v1095, 0.0
    %vm1151 = vcmp.ge.f32.partialorder %v1097, 0.0
    %vm1152 = vcmp.ge.f32.partialorder %v1100, 0.0
    %vm1153 = vcmp.ge.f32.partialorder %v1102, 0.0
    %vm1154 = vcmp.ge.f32.partialorder %v1105, 0.0
    %vm1155 = vcmp.ge.f32.partialorder %v1107, 0.0
    %vm1156 = vcmp.ge.f32.partialorder %v1110, 0.0
    %vm1157 = vcmp.ge.f32.partialorder %v1112, 0.0
    %vm1158 = vcmp.ge.f32.partialorder %v1115, 0.0
    %vm1159 = vcmp.ge.f32.partialorder %v1117, 0.0
    %vm1160 = vcmp.ge.f32.partialorder %v1120, 0.0
    %vm1161 = vcmp.ge.f32.partialorder %v1122, 0.0
    %vm1162 = vcmp.ge.f32.partialorder %v1125, 0.0
    %vm1163 = vcmp.ge.f32.partialorder %v1127, 0.0
    %vm1164 = vcmp.ge.f32.partialorder %v1130, 0.0
    %vm1165 = vcmp.ge.f32.partialorder %v1132, 0.0
    %v1166 = vmul.f32 %v1055, 0.2
    %v1167 = vmul.f32 %v1057, 0.2
    %v1168 = vmul.f32 %v1060, 0.2
    %v1169 = vmul.f32 %v1062, 0.2
    %v1170 = vmul.f32 %v1065, 0.2
    %v1171 = vmul.f32 %v1067, 0.2
    %v1172 = vmul.f32 %v1070, 0.2
    %v1173 = vmul.f32 %v1072, 0.2
    %v1174 = vmul.f32 %v1075, 0.2
    %v1175 = vmul.f32 %v1077, 0.2
    %v1176 = vmul.f32 %v1080, 0.2
    %v1177 = vmul.f32 %v1082, 0.2
    %v1178 = vmul.f32 %v1085, 0.2
    %v1179 = vmul.f32 %v1087, 0.2
    %v1180 = vmul.f32 %v1090, 0.2
    %v1181 = vmul.f32 %v1092, 0.2
    %v1182 = vmul.f32 %v1095, 0.2
    %v1183 = vmul.f32 %v1097, 0.2
    %v1184 = vmul.f32 %v1100, 0.2
    %v1185 = vmul.f32 %v1102, 0.2
    %v1186 = vmul.f32 %v1105, 0.2
    %v1187 = vmul.f32 %v1107, 0.2
    %v1188 = vmul.f32 %v1110, 0.2
    %v1189 = vmul.f32 %v1112, 0.2
    %v1190 = vmul.f32 %v1115, 0.2
    %v1191 = vmul.f32 %v1117, 0.2
    %v1192 = vmul.f32 %v1120, 0.2
    %v1193 = vmul.f32 %v1122, 0.2
    %v1194 = vmul.f32 %v1125, 0.2
    %v1195 = vmul.f32 %v1127, 0.2
    %v1196 = vmul.f32 %v1130, 0.2
    %v1197 = vmul.f32 %v1132, 0.2
    %v1198 = vsel %vm1134, %v1055, %v1166
    %v1199 = vsel %vm1135, %v1057, %v1167
    %v1200 = vsel %vm1136, %v1060, %v1168
    %v1201 = vsel %vm1137, %v1062, %v1169
    %v1202 = vsel %vm1138, %v1065, %v1170
    %v1203 = vsel %vm1139, %v1067, %v1171
    %v1204 = vsel %vm1140, %v1070, %v1172
    %v1205 = vsel %vm1141, %v1072, %v1173
    %v1206 = vsel %vm1142, %v1075, %v1174
    %v1207 = vsel %vm1143, %v1077, %v1175
    %v1208 = vsel %vm1144, %v1080, %v1176
    %v1209 = vsel %vm1145, %v1082, %v1177
    %v1210 = vsel %vm1146, %v1085, %v1178
    %v1211 = vsel %vm1147, %v1087, %v1179
    %v1212 = vsel %vm1148, %v1090, %v1180
    %v1213 = vsel %vm1149, %v1092, %v1181
    %v1214 = vsel %vm1150, %v1095, %v1182
    %v1215 = vsel %vm1151, %v1097, %v1183
    %v1216 = vsel %vm1152, %v1100, %v1184
    %v1217 = vsel %vm1153, %v1102, %v1185
    %v1218 = vsel %vm1154, %v1105, %v1186
    %v1219 = vsel %vm1155, %v1107, %v1187
    %v1220 = vsel %vm1156, %v1110, %v1188
    %v1221 = vsel %vm1157, %v1112, %v1189
    %v1222 = vsel %vm1158, %v1115, %v1190
    %v1223 = vsel %vm1159, %v1117, %v1191
    %v1224 = vsel %vm1160, %v1120, %v1192
    %v1225 = vsel %vm1161, %v1122, %v1193
    %v1226 = vsel %vm1162, %v1125, %v1194
    %v1227 = vsel %vm1163, %v1127, %v1195
    %v1228 = vsel %vm1164, %v1130, %v1196
    %v1229 = vsel %vm1165, %v1132, %v1197
    %v1230 = vpack.c.bf16 %v1199, %v1198
    %v1231 = vpack.c.bf16 %v1201, %v1200
    %v1232 = vpack.c.bf16 %v1203, %v1202
    %v1233 = vpack.c.bf16 %v1205, %v1204
    %v1234 = vpack.c.bf16 %v1207, %v1206
    %v1235 = vpack.c.bf16 %v1209, %v1208
    %v1236 = vpack.c.bf16 %v1211, %v1210
    %v1237 = vpack.c.bf16 %v1213, %v1212
    %v1238 = vpack.c.bf16 %v1215, %v1214
    %v1239 = vpack.c.bf16 %v1217, %v1216
    %v1240 = vpack.c.bf16 %v1219, %v1218
    %v1241 = vpack.c.bf16 %v1221, %v1220
    %v1242 = vpack.c.bf16 %v1223, %v1222
    %v1243 = vpack.c.bf16 %v1225, %v1224
    %v1244 = vpack.c.bf16 %v1227, %v1226
    %v1245 = vpack.c.bf16 %v1229, %v1228
    %v1246 = vld [vmem:[%s9] sm:$0xf]
    %v1247 = vld [vmem:[%s9 + $0x4] sm:$0xf]
    %v1248 = vld [vmem:[%s9 + $0x8] sm:$0xf]
    %v1249 = vld [vmem:[%s9 + $0xc] sm:$0xf]
    %v1250 = vld [vmem:[%s9 + $0x10] sm:$0xf]
    %v1251 = vld [vmem:[%s9 + $0x14] sm:$0xf]
    %v1252 = vld [vmem:[%s9 + $0x18] sm:$0xf]
    %v1253 = vld [vmem:[%s9 + $0x1c] sm:$0xf]
    %v1254 = vld [vmem:[%s10] sm:$0x1]
    %v1256 = vperm.slane %v1254, 0
    %v1266 = vunpack.c.l.b16 %v1246
    %v1267 = vunpack.c.l.b16 %v1247
    %v1268 = vunpack.c.l.b16 %v1248
    %v1269 = vunpack.c.l.b16 %v1249
    %v1270 = vunpack.c.l.b16 %v1250
    %v1271 = vunpack.c.l.b16 %v1251
    %v1272 = vunpack.c.l.b16 %v1252
    %v1273 = vunpack.c.l.b16 %v1253
    %v1274 = vpack.c.b16 %v1267, %v1266
    %v1275 = vpack.c.b16 %v1269, %v1268
    %v1276 = vpack.c.b16 %v1271, %v1270
    %v1277 = vpack.c.b16 %v1273, %v1272
    %v1283 = vsel %vm458, %v1230, 0
    %v1286 = vsel %vm458, %v1231, 0
    %v1289 = vsel %vm458, %v1232, 0
    %v1292 = vsel %vm458, %v1233, 0
    %v1295 = vsel %vm458, %v1234, 0
    %v1298 = vsel %vm458, %v1235, 0
    %v1301 = vsel %vm458, %v1236, 0
    %v1304 = vsel %vm458, %v1237, 0
    %v1307 = vsel %vm458, %v1238, 0
    %v1310 = vsel %vm458, %v1239, 0
    %v1313 = vsel %vm458, %v1240, 0
    %v1316 = vsel %vm458, %v1241, 0
    %v1319 = vsel %vm458, %v1242, 0
    %v1322 = vsel %vm458, %v1243, 0
    %v1325 = vsel %vm458, %v1244, 0
    %v1328 = vsel %vm458, %v1245, 0
    %1330 = vmatpush.bf16.msra.mxu0 0
    %1331 = vmatpush.bf16.msra.mxu0 0
    %1332 = vmatpush.bf16.msra.mxu0 0
    %1333 = vmatpush.bf16.msra.mxu0 0
    %1334 = vmatpush.bf16.msra.mxu0 %v1277
    %1335 = vmatpush.bf16.msra.mxu0 %v1276
    %1336 = vmatpush.bf16.msra.mxu0 %v1275
    %1337 = vmatpush.bf16.msra.mxu0 %v1274
    %1338 = vmatmul.bf16.gmra.mxu0 %v1283
    %v1339 = vpop.f32.mrf.mxu0
    %v1340 = vadd.f32 %v1256, %v1339
    %v1341 = vpop.f32.mrf.mxu0
    %v1342 = vadd.f32 %v1256, %v1341
    %1343 = vmatmul.bf16.gmra.mxu0 %v1286
    %v1344 = vpop.f32.mrf.mxu0
    %v1345 = vadd.f32 %v1256, %v1344
    %v1346 = vpop.f32.mrf.mxu0
    %v1347 = vadd.f32 %v1256, %v1346
    %1348 = vmatmul.bf16.gmra.mxu0 %v1289
    %v1349 = vpop.f32.mrf.mxu0
    %v1350 = vadd.f32 %v1256, %v1349
    %v1351 = vpop.f32.mrf.mxu0
    %v1352 = vadd.f32 %v1256, %v1351
    %1353 = vmatmul.bf16.gmra.mxu0 %v1292
    %v1354 = vpop.f32.mrf.mxu0
    %v1355 = vadd.f32 %v1256, %v1354
    %v1356 = vpop.f32.mrf.mxu0
    %v1357 = vadd.f32 %v1256, %v1356
    %1358 = vmatmul.bf16.gmra.mxu0 %v1295
    %v1359 = vpop.f32.mrf.mxu0
    %v1360 = vadd.f32 %v1256, %v1359
    %v1361 = vpop.f32.mrf.mxu0
    %v1362 = vadd.f32 %v1256, %v1361
    %1363 = vmatmul.bf16.gmra.mxu0 %v1298
    %v1364 = vpop.f32.mrf.mxu0
    %v1365 = vadd.f32 %v1256, %v1364
    %v1366 = vpop.f32.mrf.mxu0
    %v1367 = vadd.f32 %v1256, %v1366
    %1368 = vmatmul.bf16.gmra.mxu0 %v1301
    %v1369 = vpop.f32.mrf.mxu0
    %v1370 = vadd.f32 %v1256, %v1369
    %v1371 = vpop.f32.mrf.mxu0
    %v1372 = vadd.f32 %v1256, %v1371
    %1373 = vmatmul.bf16.gmra.mxu0 %v1304
    %v1374 = vpop.f32.mrf.mxu0
    %v1375 = vadd.f32 %v1256, %v1374
    %v1376 = vpop.f32.mrf.mxu0
    %v1377 = vadd.f32 %v1256, %v1376
    %1378 = vmatmul.bf16.gmra.mxu0 %v1307
    %v1379 = vpop.f32.mrf.mxu0
    %v1380 = vadd.f32 %v1256, %v1379
    %v1381 = vpop.f32.mrf.mxu0
    %v1382 = vadd.f32 %v1256, %v1381
    %1383 = vmatmul.bf16.gmra.mxu0 %v1310
    %v1384 = vpop.f32.mrf.mxu0
    %v1385 = vadd.f32 %v1256, %v1384
    %v1386 = vpop.f32.mrf.mxu0
    %v1387 = vadd.f32 %v1256, %v1386
    %1388 = vmatmul.bf16.gmra.mxu0 %v1313
    %v1389 = vpop.f32.mrf.mxu0
    %v1390 = vadd.f32 %v1256, %v1389
    %v1391 = vpop.f32.mrf.mxu0
    %v1392 = vadd.f32 %v1256, %v1391
    %1393 = vmatmul.bf16.gmra.mxu0 %v1316
    %v1394 = vpop.f32.mrf.mxu0
    %v1395 = vadd.f32 %v1256, %v1394
    %v1396 = vpop.f32.mrf.mxu0
    %v1397 = vadd.f32 %v1256, %v1396
    %1398 = vmatmul.bf16.gmra.mxu0 %v1319
    %v1399 = vpop.f32.mrf.mxu0
    %v1400 = vadd.f32 %v1256, %v1399
    %v1401 = vpop.f32.mrf.mxu0
    %v1402 = vadd.f32 %v1256, %v1401
    %1403 = vmatmul.bf16.gmra.mxu0 %v1322
    %v1404 = vpop.f32.mrf.mxu0
    %v1405 = vadd.f32 %v1256, %v1404
    %v1406 = vpop.f32.mrf.mxu0
    %v1407 = vadd.f32 %v1256, %v1406
    %1408 = vmatmul.bf16.gmra.mxu0 %v1325
    %v1409 = vpop.f32.mrf.mxu0
    %v1410 = vadd.f32 %v1256, %v1409
    %v1411 = vpop.f32.mrf.mxu0
    %v1412 = vadd.f32 %v1256, %v1411
    %1413 = vmatmul.bf16.gmra.mxu0 %v1328
    %v1414 = vpop.f32.mrf.mxu0
    %v1415 = vadd.f32 %v1256, %v1414
    %v1416 = vpop.f32.mrf.mxu0
    %v1417 = vadd.f32 %v1256, %v1416
    %1418 = vdwg.mxu0
    %1419 = vst [vmem:[#allocation2] sm:$0xff] %v1340
    %1420 = vst [vmem:[#allocation2 + $0x8] sm:$0xff] %v1342
    %1421 = vst [vmem:[#allocation2 + $0x10] sm:$0xff] %v1345
    %1422 = vst [vmem:[#allocation2 + $0x18] sm:$0xff] %v1347
    %1423 = vst [vmem:[#allocation2 + $0x20] sm:$0xff] %v1350
    %1424 = vst [vmem:[#allocation2 + $0x28] sm:$0xff] %v1352
    %1425 = vst [vmem:[#allocation2 + $0x30] sm:$0xff] %v1355
    %1426 = vst [vmem:[#allocation2 + $0x38] sm:$0xff] %v1357
    %1427 = vst [vmem:[#allocation2 + $0x40] sm:$0xff] %v1360
    %1428 = vst [vmem:[#allocation2 + $0x48] sm:$0xff] %v1362
    %1429 = vst [vmem:[#allocation2 + $0x50] sm:$0xff] %v1365
    %1430 = vst [vmem:[#allocation2 + $0x58] sm:$0xff] %v1367
    %1431 = vst [vmem:[#allocation2 + $0x60] sm:$0xff] %v1370
    %1432 = vst [vmem:[#allocation2 + $0x68] sm:$0xff] %v1372
    %1433 = vst [vmem:[#allocation2 + $0x70] sm:$0xff] %v1375
    %1434 = vst [vmem:[#allocation2 + $0x78] sm:$0xff] %v1377
    %1435 = vst [vmem:[#allocation2 + $0x80] sm:$0xff] %v1380
    %1436 = vst [vmem:[#allocation2 + $0x88] sm:$0xff] %v1382
    %1437 = vst [vmem:[#allocation2 + $0x90] sm:$0xff] %v1385
    %1438 = vst [vmem:[#allocation2 + $0x98] sm:$0xff] %v1387
    %1439 = vst [vmem:[#allocation2 + $0xa0] sm:$0xff] %v1390
    %1440 = vst [vmem:[#allocation2 + $0xa8] sm:$0xff] %v1392
    %1441 = vst [vmem:[#allocation2 + $0xb0] sm:$0xff] %v1395
    %1442 = vst [vmem:[#allocation2 + $0xb8] sm:$0xff] %v1397
    %1443 = vst [vmem:[#allocation2 + $0xc0] sm:$0xff] %v1400
    %1444 = vst [vmem:[#allocation2 + $0xc8] sm:$0xff] %v1402
    %1445 = vst [vmem:[#allocation2 + $0xd0] sm:$0xff] %v1405
    %1446 = vst [vmem:[#allocation2 + $0xd8] sm:$0xff] %v1407
    %1447 = vst [vmem:[#allocation2 + $0xe0] sm:$0xff] %v1410
    %1448 = vst [vmem:[#allocation2 + $0xe8] sm:$0xff] %v1412
    %1449 = vst [vmem:[#allocation2 + $0xf0] sm:$0xff] %v1415
    %1450 = vst [vmem:[#allocation2 + $0xf8] sm:$0xff] %v1417
    // Predicated region
    $region46: #{tpu_custom_call.1} parent=1 // pred_check
      _
    $region47: #{tpu_custom_call.1} parent=1 // pred_check_branch
      %1452 = sbr.rel (0) target = $region49
    $region48: #{tpu_custom_call.1} parent=1 // pred_region
      %1454 = vsyncadd [#allocation3], 0
      %s1455 = sshll.u32 [#allocation2], 4
      %s1456 = int_to_ptr.vmem [resolvable:$true] %s1455
      %s1457 = sshll.u32 %s11, 4
      %s1458 = int_to_ptr.hbm [resolvable:$true] %s1457
      %1463 = dma.vmem_to_hbm [thread:$0]  %s1456, 4096, %s1458, [#allocation3], 128, 128, 8
    $region49: #{tpu_custom_call.1} parent=1 // pred_fallthru
      _
    // Predicated region
    $region50: #{tpu_custom_call.1} parent=1 // pred_check
      _
    $region51: #{tpu_custom_call.1} parent=1 // pred_check_branch
      %1465 = sbr.rel (0) target = $region53
    $region52: #{tpu_custom_call.1} parent=1 // pred_region
      %1467 = dma.done [#allocation3], 4096
    $region53: #{tpu_custom_call.1} parent=1 // pred_fallthru
      _
    %1468 = vsyncpa [#allocation3], 1

</llo_original>
